<compile_context>
chip_gen: v5e
topology: v5e:2x2
jax: 0.10.0
libtpu: 0.0.40
codegen_flags: <defaults>
</compile_context>

<pallas_src>
import functools

import jax
import jax.numpy as jnp
import numpy as np
from jax.experimental import pallas as pl
from jax.experimental.pallas import tpu as pltpu


def _lego_kernel(w_ref, coeff_ref, sel_ref, mask_ref, x_ref, o_ref, first_ref,
                 *, N, C_IN, LEGO, C_OUT, HW, W, K):
    """Fused KxK conv (padding=K//2, no bias) + sparse one-hot 1x1 conv (no bias).

    w_ref    : VMEM f32[K*K, LEGO, C_IN, 1]  first-conv weights as per-tap columns
    coeff_ref: SMEM f32[C_OUT]               coefficient of the selected lego channel
    sel_ref  : SMEM i32[C_OUT]               argmax lego index per output channel
    mask_ref : VMEM f32[K*K, HW]             boundary masks (0/1) per tap offset
    x_ref    : VMEM f32[N, C_IN, HW]         input, spatial dims flattened (lane dense)
    o_ref    : VMEM f32[N, C_OUT, HW]        output, spatial dims flattened
    first_ref: VMEM f32[LEGO, N, HW]         scratch: intermediate lego feature maps
    """
    pad = K // 2

    # ---- first conv: KxK taps as lane rolls of the flat plane + boundary masks ----
    for n in range(N):
        xn = x_ref[n]                                       # (C_IN, HW)
        shifted = []
        for kh in range(K):
            for kw in range(K):
                d = (kh - pad) * W + (kw - pad)             # flat tap offset
                t = kh * K + kw
                s = xn if d == 0 else pltpu.roll(xn, (-d) % HW, axis=1)
                # rolled[c, p] == xn[c, (p + d) % HW]; mask zeroes out-of-bounds taps
                shifted.append(mask_ref[t] * s)             # (C_IN, HW)
        for l in range(LEGO):
            acc = shifted[0] * w_ref[0, l]                  # (C_IN, 1) lane-broadcast
            for t in range(1, K * K):
                acc = acc + shifted[t] * w_ref[t, l]
            first_ref[l, n] = jnp.sum(acc, axis=0)          # reduce over input channels

    # ---- second conv: one-hot 1x1 -> gather the selected lego map, scale ----
    for o in range(C_OUT):
        f = first_ref[sel_ref[o]]                           # (N, HW) dynamic lego select
        co = coeff_ref[o]
        for n in range(N):
            o_ref[n, o] = (co * f[n]).astype(o_ref.dtype)


def lego_cnn_forward(x, lego_lego, second_coeff, second_comb, kernel_size):
    """x: (N, C_in, H, W) f32.  Returns (N, C_out, H, W) f32."""
    N, C_IN, H, W = x.shape
    LEGO = lego_lego.shape[0]
    C_OUT = second_coeff.shape[1]
    K = int(kernel_size)
    assert K % 2 == 1, "padding=K//2 'same' output assumed (PyTorch even-K differs)"
    HW = H * W
    pad = K // 2

    # -- sparse 1x1 kernel: per output channel, argmax lego index + its coefficient --
    comb = second_comb[0, :, :, 0, 0]                        # (C_OUT, LEGO)
    coef = second_coeff[0, :, :, 0, 0]                       # (C_OUT, LEGO)
    sel = jnp.argmax(comb, axis=1).astype(jnp.int32)         # (C_OUT,)
    coeff = jnp.take_along_axis(coef, sel[:, None], axis=1)[:, 0].astype(jnp.float32)

    # -- first-conv weights as per-tap columns: wA[t, l, c, 0] = w[l, c, kh, kw] --
    wA = jnp.transpose(lego_lego, (2, 3, 0, 1)).reshape(K * K, LEGO, C_IN, 1)
    wA = wA.astype(jnp.float32)

    # -- boundary masks per tap offset (compile-time constants) --
    ii, jj = np.divmod(np.arange(HW), W)
    masks_np = np.zeros((K * K, HW), np.float32)
    for kh in range(K):
        for kw in range(K):
            dh, dw = kh - pad, kw - pad
            valid = (ii + dh >= 0) & (ii + dh < H) & (jj + dw >= 0) & (jj + dw < W)
            masks_np[kh * K + kw] = valid
    masks = jnp.asarray(masks_np)

    x_flat = x.reshape(N, C_IN, HW)                          # free reshape, lane-dense tail

    kern = functools.partial(
        _lego_kernel, N=N, C_IN=C_IN, LEGO=LEGO, C_OUT=C_OUT, HW=HW, W=W, K=K
    )
    flops = 2 * N * HW * (LEGO * C_IN * K * K + C_OUT)
    bytes_accessed = 4 * (x_flat.size + N * C_OUT * HW + wA.size + masks.size) + 8 * C_OUT

    out = pl.pallas_call(
        kern,
        out_shape=jax.ShapeDtypeStruct((N, C_OUT, HW), jnp.float32),
        grid_spec=pltpu.PrefetchScalarGridSpec(
            num_scalar_prefetch=0,
            grid=(1,),  # whole batch in one step: amortizes per-step fixed overhead
            in_specs=[
                pl.BlockSpec((K * K, LEGO, C_IN, 1), lambda i: (0, 0, 0, 0)),  # weights
                pl.BlockSpec(memory_space=pltpu.MemorySpace.SMEM),             # coeff
                pl.BlockSpec(memory_space=pltpu.MemorySpace.SMEM),             # sel
                pl.BlockSpec((K * K, HW), lambda i: (0, 0)),                   # masks
                pl.BlockSpec((N, C_IN, HW), lambda i: (0, 0, 0)),              # input
            ],
            out_specs=pl.BlockSpec((N, C_OUT, HW), lambda i: (0, 0, 0)),
            scratch_shapes=[pltpu.VMEM((LEGO, N, HW), jnp.float32)],
        ),
        compiler_params=pltpu.CompilerParams(dimension_semantics=("arbitrary",)),
        cost_estimate=pl.CostEstimate(
            flops=flops, transcendentals=0, bytes_accessed=bytes_accessed
        ),
    )(wA, coeff, sel, masks, x_flat)
    return out.reshape(N, C_OUT, H, W)


if __name__ == "__main__":
    # LegoCNN(ina=4, out=8, kernel_size=3, split=2, lego=0.5)
    INA, OUT, KSIZE, SPLIT, LEGO_FRAC = 4, 8, 3, 2, 0.5
    LEGO = int(OUT * LEGO_FRAC)          # 4
    LEGO_2 = LEGO // 2                   # 2 -> lego_lego has 2*LEGO_2 = 4 output channels
    N, H, W = 2, 16, 16

    key = jax.random.PRNGKey(0)
    k1, k2k, k3, kx = jax.random.split(key, 4)

    # Deterministic synthetic weights (kaiming_normal-style scale, fan_in mode)
    fan_in1 = INA * KSIZE * KSIZE
    lego_lego = jax.random.normal(k1, (2 * LEGO_2, INA, KSIZE, KSIZE), jnp.float32) * np.sqrt(2.0 / fan_in1)
    second_coeff = jax.random.normal(k2k, (SPLIT, OUT, LEGO, 1, 1), jnp.float32) * np.sqrt(2.0 / LEGO)
    second_comb = jax.random.normal(k3, (SPLIT, OUT, LEGO, 1, 1), jnp.float32) * np.sqrt(2.0 / LEGO)
    x = jax.random.normal(kx, (N, INA, H, W), jnp.float32)

    fwd = jax.jit(lego_cnn_forward, static_argnums=(4,))
    out = jax.block_until_ready(fwd(x, lego_lego, second_coeff, second_comb, KSIZE))

    # Plain-JAX reference for a sanity check of the fused Pallas kernel.
    first_ref = jax.lax.conv_general_dilated(
        x, lego_lego, (1, 1), [(KSIZE // 2, KSIZE // 2)] * 2,
        dimension_numbers=("NCHW", "OIHW", "NCHW"))
    idx = jnp.argmax(second_comb, axis=2)[:, :, None, :, :]
    onehot = (jnp.arange(LEGO).reshape(1, 1, LEGO, 1, 1) == idx).astype(jnp.float32)
    sk = second_coeff[0] * onehot[0]
    ref = jax.lax.conv_general_dilated(
        first_ref, sk, (1, 1), [(0, 0), (0, 0)],
        dimension_numbers=("NCHW", "OIHW", "NCHW"))

    assert out.shape == (N, OUT, H, W)
    np.testing.assert_allclose(np.asarray(out), np.asarray(ref), rtol=1e-4, atol=1e-4)
    print("KERNEL_OK")
</pallas_src>

<mosaic_0001>
module attributes {stable_mosaic.version = 11 : i64} {
  func.func @_lego_kernel(%arg0: i32, %arg1: memref<9x4x4x1xf32, #tpu.memory_space<vmem>>, %arg2: memref<8xf32, #tpu.memory_space<smem>>, %arg3: memref<8xi32, #tpu.memory_space<smem>>, %arg4: memref<9x256xf32, #tpu.memory_space<vmem>>, %arg5: memref<2x4x256xf32, #tpu.memory_space<vmem>>, %arg6: memref<2x8x256xf32, #tpu.memory_space<vmem>>, %arg7: memref<4x2x256xf32, #tpu.memory_space<vmem>>) attributes {dimension_semantics = [#tpu.dimension_semantics<arbitrary>], iteration_bounds = array<i64: 1>, scalar_prefetch = 0 : i64, scratch_operands = 1 : i64, tpu.core_type = #tpu.core_type<tc>, window_params = [{pipeline_mode = #tpu.pipeline_mode<synchronous>, transform_indices = @transform_0, window_bounds = array<i64: 9, 4, 4, 1>}, {transform_indices = @transform_1, window_bounds = array<i64: 8>}, {transform_indices = @transform_2, window_bounds = array<i64: 8>}, {pipeline_mode = #tpu.pipeline_mode<synchronous>, transform_indices = @transform_3, window_bounds = array<i64: 9, 256>}, {pipeline_mode = #tpu.pipeline_mode<synchronous>, transform_indices = @transform_4, window_bounds = array<i64: 2, 4, 256>}, {pipeline_mode = #tpu.pipeline_mode<synchronous>, transform_indices = @transform_5, window_bounds = array<i64: 2, 8, 256>}]} {
    %c0 = arith.constant 0 : index
    %c0_0 = arith.constant 0 : index
    %c0_1 = arith.constant 0 : index
    %0 = vector.load %arg5[%c0, %c0_0, %c0_1] : memref<2x4x256xf32, #tpu.memory_space<vmem>>, vector<1x4x256xf32>
    %1 = vector.shape_cast %0 : vector<1x4x256xf32> to vector<4x256xf32>
    %c17_i32 = arith.constant 17 : i32
    %2 = tpu.dynamic_rotate %1 by %c17_i32 dim 1 : vector<4x256xf32>, i32 -> vector<4x256xf32>
    %c0_2 = arith.constant 0 : index
    %c0_3 = arith.constant 0 : index
    %3 = vector.load %arg4[%c0_2, %c0_3] : memref<9x256xf32, #tpu.memory_space<vmem>>, vector<1x256xf32>
    %4 = vector.shape_cast %3 : vector<1x256xf32> to vector<256xf32>
    %5 = vector.shape_cast %4 : vector<256xf32> to vector<1x256xf32>
    %6 = vector.broadcast %5 : vector<1x256xf32> to vector<4x256xf32>
    %7 = arith.mulf %6, %2 : vector<4x256xf32>
    %c16_i32 = arith.constant 16 : i32
    %8 = tpu.dynamic_rotate %1 by %c16_i32 dim 1 : vector<4x256xf32>, i32 -> vector<4x256xf32>
    %c1 = arith.constant 1 : index
    %c0_4 = arith.constant 0 : index
    %9 = vector.load %arg4[%c1, %c0_4] : memref<9x256xf32, #tpu.memory_space<vmem>>, vector<1x256xf32>
    %10 = vector.shape_cast %9 : vector<1x256xf32> to vector<256xf32>
    %11 = vector.shape_cast %10 : vector<256xf32> to vector<1x256xf32>
    %12 = vector.broadcast %11 : vector<1x256xf32> to vector<4x256xf32>
    %13 = arith.mulf %12, %8 : vector<4x256xf32>
    %c15_i32 = arith.constant 15 : i32
    %14 = tpu.dynamic_rotate %1 by %c15_i32 dim 1 : vector<4x256xf32>, i32 -> vector<4x256xf32>
    %c2 = arith.constant 2 : index
    %c0_5 = arith.constant 0 : index
    %15 = vector.load %arg4[%c2, %c0_5] : memref<9x256xf32, #tpu.memory_space<vmem>>, vector<1x256xf32>
    %16 = vector.shape_cast %15 : vector<1x256xf32> to vector<256xf32>
    %17 = vector.shape_cast %16 : vector<256xf32> to vector<1x256xf32>
    %18 = vector.broadcast %17 : vector<1x256xf32> to vector<4x256xf32>
    %19 = arith.mulf %18, %14 : vector<4x256xf32>
    %c1_i32 = arith.constant 1 : i32
    %20 = tpu.dynamic_rotate %1 by %c1_i32 dim 1 : vector<4x256xf32>, i32 -> vector<4x256xf32>
    %c3 = arith.constant 3 : index
    %c0_6 = arith.constant 0 : index
    %21 = vector.load %arg4[%c3, %c0_6] : memref<9x256xf32, #tpu.memory_space<vmem>>, vector<1x256xf32>
    %22 = vector.shape_cast %21 : vector<1x256xf32> to vector<256xf32>
    %23 = vector.shape_cast %22 : vector<256xf32> to vector<1x256xf32>
    %24 = vector.broadcast %23 : vector<1x256xf32> to vector<4x256xf32>
    %25 = arith.mulf %24, %20 : vector<4x256xf32>
    %c4 = arith.constant 4 : index
    %c0_7 = arith.constant 0 : index
    %26 = vector.load %arg4[%c4, %c0_7] : memref<9x256xf32, #tpu.memory_space<vmem>>, vector<1x256xf32>
    %27 = vector.shape_cast %26 : vector<1x256xf32> to vector<256xf32>
    %28 = vector.shape_cast %27 : vector<256xf32> to vector<1x256xf32>
    %29 = vector.broadcast %28 : vector<1x256xf32> to vector<4x256xf32>
    %30 = arith.mulf %29, %1 : vector<4x256xf32>
    %c255_i32 = arith.constant 255 : i32
    %31 = tpu.dynamic_rotate %1 by %c255_i32 dim 1 : vector<4x256xf32>, i32 -> vector<4x256xf32>
    %c5 = arith.constant 5 : index
    %c0_8 = arith.constant 0 : index
    %32 = vector.load %arg4[%c5, %c0_8] : memref<9x256xf32, #tpu.memory_space<vmem>>, vector<1x256xf32>
    %33 = vector.shape_cast %32 : vector<1x256xf32> to vector<256xf32>
    %34 = vector.shape_cast %33 : vector<256xf32> to vector<1x256xf32>
    %35 = vector.broadcast %34 : vector<1x256xf32> to vector<4x256xf32>
    %36 = arith.mulf %35, %31 : vector<4x256xf32>
    %c241_i32 = arith.constant 241 : i32
    %37 = tpu.dynamic_rotate %1 by %c241_i32 dim 1 : vector<4x256xf32>, i32 -> vector<4x256xf32>
    %c6 = arith.constant 6 : index
    %c0_9 = arith.constant 0 : index
    %38 = vector.load %arg4[%c6, %c0_9] : memref<9x256xf32, #tpu.memory_space<vmem>>, vector<1x256xf32>
    %39 = vector.shape_cast %38 : vector<1x256xf32> to vector<256xf32>
    %40 = vector.shape_cast %39 : vector<256xf32> to vector<1x256xf32>
    %41 = vector.broadcast %40 : vector<1x256xf32> to vector<4x256xf32>
    %42 = arith.mulf %41, %37 : vector<4x256xf32>
    %c240_i32 = arith.constant 240 : i32
    %43 = tpu.dynamic_rotate %1 by %c240_i32 dim 1 : vector<4x256xf32>, i32 -> vector<4x256xf32>
    %c7 = arith.constant 7 : index
    %c0_10 = arith.constant 0 : index
    %44 = vector.load %arg4[%c7, %c0_10] : memref<9x256xf32, #tpu.memory_space<vmem>>, vector<1x256xf32>
    %45 = vector.shape_cast %44 : vector<1x256xf32> to vector<256xf32>
    %46 = vector.shape_cast %45 : vector<256xf32> to vector<1x256xf32>
    %47 = vector.broadcast %46 : vector<1x256xf32> to vector<4x256xf32>
    %48 = arith.mulf %47, %43 : vector<4x256xf32>
    %c239_i32 = arith.constant 239 : i32
    %49 = tpu.dynamic_rotate %1 by %c239_i32 dim 1 : vector<4x256xf32>, i32 -> vector<4x256xf32>
    %c8 = arith.constant 8 : index
    %c0_11 = arith.constant 0 : index
    %50 = vector.load %arg4[%c8, %c0_11] : memref<9x256xf32, #tpu.memory_space<vmem>>, vector<1x256xf32>
    %51 = vector.shape_cast %50 : vector<1x256xf32> to vector<256xf32>
    %52 = vector.shape_cast %51 : vector<256xf32> to vector<1x256xf32>
    %53 = vector.broadcast %52 : vector<1x256xf32> to vector<4x256xf32>
    %54 = arith.mulf %53, %49 : vector<4x256xf32>
    %c0_12 = arith.constant 0 : index
    %c0_13 = arith.constant 0 : index
    %c0_14 = arith.constant 0 : index
    %c0_15 = arith.constant 0 : index
    %55 = vector.load %arg1[%c0_12, %c0_13, %c0_14, %c0_15] : memref<9x4x4x1xf32, #tpu.memory_space<vmem>>, vector<1x1x4x1xf32>
    %56 = vector.shape_cast %55 : vector<1x1x4x1xf32> to vector<4x1xf32>
    %57 = vector.broadcast %56 : vector<4x1xf32> to vector<4x256xf32>
    %58 = arith.mulf %7, %57 : vector<4x256xf32>
    %c1_16 = arith.constant 1 : index
    %c0_17 = arith.constant 0 : index
    %c0_18 = arith.constant 0 : index
    %c0_19 = arith.constant 0 : index
    %59 = vector.load %arg1[%c1_16, %c0_17, %c0_18, %c0_19] : memref<9x4x4x1xf32, #tpu.memory_space<vmem>>, vector<1x1x4x1xf32>
    %60 = vector.shape_cast %59 : vector<1x1x4x1xf32> to vector<4x1xf32>
    %61 = vector.broadcast %60 : vector<4x1xf32> to vector<4x256xf32>
    %62 = arith.mulf %13, %61 : vector<4x256xf32>
    %63 = arith.addf %58, %62 : vector<4x256xf32>
    %c2_20 = arith.constant 2 : index
    %c0_21 = arith.constant 0 : index
    %c0_22 = arith.constant 0 : index
    %c0_23 = arith.constant 0 : index
    %64 = vector.load %arg1[%c2_20, %c0_21, %c0_22, %c0_23] : memref<9x4x4x1xf32, #tpu.memory_space<vmem>>, vector<1x1x4x1xf32>
    %65 = vector.shape_cast %64 : vector<1x1x4x1xf32> to vector<4x1xf32>
    %66 = vector.broadcast %65 : vector<4x1xf32> to vector<4x256xf32>
    %67 = arith.mulf %19, %66 : vector<4x256xf32>
    %68 = arith.addf %63, %67 : vector<4x256xf32>
    %c3_24 = arith.constant 3 : index
    %c0_25 = arith.constant 0 : index
    %c0_26 = arith.constant 0 : index
    %c0_27 = arith.constant 0 : index
    %69 = vector.load %arg1[%c3_24, %c0_25, %c0_26, %c0_27] : memref<9x4x4x1xf32, #tpu.memory_space<vmem>>, vector<1x1x4x1xf32>
    %70 = vector.shape_cast %69 : vector<1x1x4x1xf32> to vector<4x1xf32>
    %71 = vector.broadcast %70 : vector<4x1xf32> to vector<4x256xf32>
    %72 = arith.mulf %25, %71 : vector<4x256xf32>
    %73 = arith.addf %68, %72 : vector<4x256xf32>
    %c4_28 = arith.constant 4 : index
    %c0_29 = arith.constant 0 : index
    %c0_30 = arith.constant 0 : index
    %c0_31 = arith.constant 0 : index
    %74 = vector.load %arg1[%c4_28, %c0_29, %c0_30, %c0_31] : memref<9x4x4x1xf32, #tpu.memory_space<vmem>>, vector<1x1x4x1xf32>
    %75 = vector.shape_cast %74 : vector<1x1x4x1xf32> to vector<4x1xf32>
    %76 = vector.broadcast %75 : vector<4x1xf32> to vector<4x256xf32>
    %77 = arith.mulf %30, %76 : vector<4x256xf32>
    %78 = arith.addf %73, %77 : vector<4x256xf32>
    %c5_32 = arith.constant 5 : index
    %c0_33 = arith.constant 0 : index
    %c0_34 = arith.constant 0 : index
    %c0_35 = arith.constant 0 : index
    %79 = vector.load %arg1[%c5_32, %c0_33, %c0_34, %c0_35] : memref<9x4x4x1xf32, #tpu.memory_space<vmem>>, vector<1x1x4x1xf32>
    %80 = vector.shape_cast %79 : vector<1x1x4x1xf32> to vector<4x1xf32>
    %81 = vector.broadcast %80 : vector<4x1xf32> to vector<4x256xf32>
    %82 = arith.mulf %36, %81 : vector<4x256xf32>
    %83 = arith.addf %78, %82 : vector<4x256xf32>
    %c6_36 = arith.constant 6 : index
    %c0_37 = arith.constant 0 : index
    %c0_38 = arith.constant 0 : index
    %c0_39 = arith.constant 0 : index
    %84 = vector.load %arg1[%c6_36, %c0_37, %c0_38, %c0_39] : memref<9x4x4x1xf32, #tpu.memory_space<vmem>>, vector<1x1x4x1xf32>
    %85 = vector.shape_cast %84 : vector<1x1x4x1xf32> to vector<4x1xf32>
    %86 = vector.broadcast %85 : vector<4x1xf32> to vector<4x256xf32>
    %87 = arith.mulf %42, %86 : vector<4x256xf32>
    %88 = arith.addf %83, %87 : vector<4x256xf32>
    %c7_40 = arith.constant 7 : index
    %c0_41 = arith.constant 0 : index
    %c0_42 = arith.constant 0 : index
    %c0_43 = arith.constant 0 : index
    %89 = vector.load %arg1[%c7_40, %c0_41, %c0_42, %c0_43] : memref<9x4x4x1xf32, #tpu.memory_space<vmem>>, vector<1x1x4x1xf32>
    %90 = vector.shape_cast %89 : vector<1x1x4x1xf32> to vector<4x1xf32>
    %91 = vector.broadcast %90 : vector<4x1xf32> to vector<4x256xf32>
    %92 = arith.mulf %48, %91 : vector<4x256xf32>
    %93 = arith.addf %88, %92 : vector<4x256xf32>
    %c8_44 = arith.constant 8 : index
    %c0_45 = arith.constant 0 : index
    %c0_46 = arith.constant 0 : index
    %c0_47 = arith.constant 0 : index
    %94 = vector.load %arg1[%c8_44, %c0_45, %c0_46, %c0_47] : memref<9x4x4x1xf32, #tpu.memory_space<vmem>>, vector<1x1x4x1xf32>
    %95 = vector.shape_cast %94 : vector<1x1x4x1xf32> to vector<4x1xf32>
    %96 = vector.broadcast %95 : vector<4x1xf32> to vector<4x256xf32>
    %97 = arith.mulf %54, %96 : vector<4x256xf32>
    %98 = arith.addf %93, %97 : vector<4x256xf32>
    %cst = arith.constant dense<0.000000e+00> : vector<256xf32>
    %99 = vector.multi_reduction <add>, %98, %cst [0] : vector<4x256xf32> to vector<256xf32>
    %c0_48 = arith.constant 0 : index
    %c0_49 = arith.constant 0 : index
    %c0_50 = arith.constant 0 : index
    %100 = vector.load %arg7[%c0_48, %c0_49, %c0_50] : memref<4x2x256xf32, #tpu.memory_space<vmem>>, vector<1x1x256xf32>
    %101 = vector.shape_cast %100 : vector<1x1x256xf32> to vector<256xf32>
    %102 = vector.shape_cast %99 : vector<256xf32> to vector<1x1x256xf32>
    tpu.vector_store %arg7[%c0_48, %c0_49, %c0_50], %102 {strides = array<i32>} : memref<4x2x256xf32, #tpu.memory_space<vmem>>, vector<1x1x256xf32>,
    %c0_51 = arith.constant 0 : index
    %c1_52 = arith.constant 1 : index
    %c0_53 = arith.constant 0 : index
    %c0_54 = arith.constant 0 : index
    %103 = vector.load %arg1[%c0_51, %c1_52, %c0_53, %c0_54] : memref<9x4x4x1xf32, #tpu.memory_space<vmem>>, vector<1x1x4x1xf32>
    %104 = vector.shape_cast %103 : vector<1x1x4x1xf32> to vector<4x1xf32>
    %105 = vector.broadcast %104 : vector<4x1xf32> to vector<4x256xf32>
    %106 = arith.mulf %7, %105 : vector<4x256xf32>
    %c1_55 = arith.constant 1 : index
    %c1_56 = arith.constant 1 : index
    %c0_57 = arith.constant 0 : index
    %c0_58 = arith.constant 0 : index
    %107 = vector.load %arg1[%c1_55, %c1_56, %c0_57, %c0_58] : memref<9x4x4x1xf32, #tpu.memory_space<vmem>>, vector<1x1x4x1xf32>
    %108 = vector.shape_cast %107 : vector<1x1x4x1xf32> to vector<4x1xf32>
    %109 = vector.broadcast %108 : vector<4x1xf32> to vector<4x256xf32>
    %110 = arith.mulf %13, %109 : vector<4x256xf32>
    %111 = arith.addf %106, %110 : vector<4x256xf32>
    %c2_59 = arith.constant 2 : index
    %c1_60 = arith.constant 1 : index
    %c0_61 = arith.constant 0 : index
    %c0_62 = arith.constant 0 : index
    %112 = vector.load %arg1[%c2_59, %c1_60, %c0_61, %c0_62] : memref<9x4x4x1xf32, #tpu.memory_space<vmem>>, vector<1x1x4x1xf32>
    %113 = vector.shape_cast %112 : vector<1x1x4x1xf32> to vector<4x1xf32>
    %114 = vector.broadcast %113 : vector<4x1xf32> to vector<4x256xf32>
    %115 = arith.mulf %19, %114 : vector<4x256xf32>
    %116 = arith.addf %111, %115 : vector<4x256xf32>
    %c3_63 = arith.constant 3 : index
    %c1_64 = arith.constant 1 : index
    %c0_65 = arith.constant 0 : index
    %c0_66 = arith.constant 0 : index
    %117 = vector.load %arg1[%c3_63, %c1_64, %c0_65, %c0_66] : memref<9x4x4x1xf32, #tpu.memory_space<vmem>>, vector<1x1x4x1xf32>
    %118 = vector.shape_cast %117 : vector<1x1x4x1xf32> to vector<4x1xf32>
    %119 = vector.broadcast %118 : vector<4x1xf32> to vector<4x256xf32>
    %120 = arith.mulf %25, %119 : vector<4x256xf32>
    %121 = arith.addf %116, %120 : vector<4x256xf32>
    %c4_67 = arith.constant 4 : index
    %c1_68 = arith.constant 1 : index
    %c0_69 = arith.constant 0 : index
    %c0_70 = arith.constant 0 : index
    %122 = vector.load %arg1[%c4_67, %c1_68, %c0_69, %c0_70] : memref<9x4x4x1xf32, #tpu.memory_space<vmem>>, vector<1x1x4x1xf32>
    %123 = vector.shape_cast %122 : vector<1x1x4x1xf32> to vector<4x1xf32>
    %124 = vector.broadcast %123 : vector<4x1xf32> to vector<4x256xf32>
    %125 = arith.mulf %30, %124 : vector<4x256xf32>
    %126 = arith.addf %121, %125 : vector<4x256xf32>
    %c5_71 = arith.constant 5 : index
    %c1_72 = arith.constant 1 : index
    %c0_73 = arith.constant 0 : index
    %c0_74 = arith.constant 0 : index
    %127 = vector.load %arg1[%c5_71, %c1_72, %c0_73, %c0_74] : memref<9x4x4x1xf32, #tpu.memory_space<vmem>>, vector<1x1x4x1xf32>
    %128 = vector.shape_cast %127 : vector<1x1x4x1xf32> to vector<4x1xf32>
    %129 = vector.broadcast %128 : vector<4x1xf32> to vector<4x256xf32>
    %130 = arith.mulf %36, %129 : vector<4x256xf32>
    %131 = arith.addf %126, %130 : vector<4x256xf32>
    %c6_75 = arith.constant 6 : index
    %c1_76 = arith.constant 1 : index
    %c0_77 = arith.constant 0 : index
    %c0_78 = arith.constant 0 : index
    %132 = vector.load %arg1[%c6_75, %c1_76, %c0_77, %c0_78] : memref<9x4x4x1xf32, #tpu.memory_space<vmem>>, vector<1x1x4x1xf32>
    %133 = vector.shape_cast %132 : vector<1x1x4x1xf32> to vector<4x1xf32>
    %134 = vector.broadcast %133 : vector<4x1xf32> to vector<4x256xf32>
    %135 = arith.mulf %42, %134 : vector<4x256xf32>
    %136 = arith.addf %131, %135 : vector<4x256xf32>
    %c7_79 = arith.constant 7 : index
    %c1_80 = arith.constant 1 : index
    %c0_81 = arith.constant 0 : index
    %c0_82 = arith.constant 0 : index
    %137 = vector.load %arg1[%c7_79, %c1_80, %c0_81, %c0_82] : memref<9x4x4x1xf32, #tpu.memory_space<vmem>>, vector<1x1x4x1xf32>
    %138 = vector.shape_cast %137 : vector<1x1x4x1xf32> to vector<4x1xf32>
    %139 = vector.broadcast %138 : vector<4x1xf32> to vector<4x256xf32>
    %140 = arith.mulf %48, %139 : vector<4x256xf32>
    %141 = arith.addf %136, %140 : vector<4x256xf32>
    %c8_83 = arith.constant 8 : index
    %c1_84 = arith.constant 1 : index
    %c0_85 = arith.constant 0 : index
    %c0_86 = arith.constant 0 : index
    %142 = vector.load %arg1[%c8_83, %c1_84, %c0_85, %c0_86] : memref<9x4x4x1xf32, #tpu.memory_space<vmem>>, vector<1x1x4x1xf32>
    %143 = vector.shape_cast %142 : vector<1x1x4x1xf32> to vector<4x1xf32>
    %144 = vector.broadcast %143 : vector<4x1xf32> to vector<4x256xf32>
    %145 = arith.mulf %54, %144 : vector<4x256xf32>
    %146 = arith.addf %141, %145 : vector<4x256xf32>
    %cst_87 = arith.constant dense<0.000000e+00> : vector<256xf32>
    %147 = vector.multi_reduction <add>, %146, %cst_87 [0] : vector<4x256xf32> to vector<256xf32>
    %c1_88 = arith.constant 1 : index
    %c0_89 = arith.constant 0 : index
    %c0_90 = arith.constant 0 : index
    %148 = vector.load %arg7[%c1_88, %c0_89, %c0_90] : memref<4x2x256xf32, #tpu.memory_space<vmem>>, vector<1x1x256xf32>
    %149 = vector.shape_cast %148 : vector<1x1x256xf32> to vector<256xf32>
    %150 = vector.shape_cast %147 : vector<256xf32> to vector<1x1x256xf32>
    tpu.vector_store %arg7[%c1_88, %c0_89, %c0_90], %150 {strides = array<i32>} : memref<4x2x256xf32, #tpu.memory_space<vmem>>, vector<1x1x256xf32>,
    %c0_91 = arith.constant 0 : index
    %c2_92 = arith.constant 2 : index
    %c0_93 = arith.constant 0 : index
    %c0_94 = arith.constant 0 : index
    %151 = vector.load %arg1[%c0_91, %c2_92, %c0_93, %c0_94] : memref<9x4x4x1xf32, #tpu.memory_space<vmem>>, vector<1x1x4x1xf32>
    %152 = vector.shape_cast %151 : vector<1x1x4x1xf32> to vector<4x1xf32>
    %153 = vector.broadcast %152 : vector<4x1xf32> to vector<4x256xf32>
    %154 = arith.mulf %7, %153 : vector<4x256xf32>
    %c1_95 = arith.constant 1 : index
    %c2_96 = arith.constant 2 : index
    %c0_97 = arith.constant 0 : index
    %c0_98 = arith.constant 0 : index
    %155 = vector.load %arg1[%c1_95, %c2_96, %c0_97, %c0_98] : memref<9x4x4x1xf32, #tpu.memory_space<vmem>>, vector<1x1x4x1xf32>
    %156 = vector.shape_cast %155 : vector<1x1x4x1xf32> to vector<4x1xf32>
    %157 = vector.broadcast %156 : vector<4x1xf32> to vector<4x256xf32>
    %158 = arith.mulf %13, %157 : vector<4x256xf32>
    %159 = arith.addf %154, %158 : vector<4x256xf32>
    %c2_99 = arith.constant 2 : index
    %c2_100 = arith.constant 2 : index
    %c0_101 = arith.constant 0 : index
    %c0_102 = arith.constant 0 : index
    %160 = vector.load %arg1[%c2_99, %c2_100, %c0_101, %c0_102] : memref<9x4x4x1xf32, #tpu.memory_space<vmem>>, vector<1x1x4x1xf32>
    %161 = vector.shape_cast %160 : vector<1x1x4x1xf32> to vector<4x1xf32>
    %162 = vector.broadcast %161 : vector<4x1xf32> to vector<4x256xf32>
    %163 = arith.mulf %19, %162 : vector<4x256xf32>
    %164 = arith.addf %159, %163 : vector<4x256xf32>
    %c3_103 = arith.constant 3 : index
    %c2_104 = arith.constant 2 : index
    %c0_105 = arith.constant 0 : index
    %c0_106 = arith.constant 0 : index
    %165 = vector.load %arg1[%c3_103, %c2_104, %c0_105, %c0_106] : memref<9x4x4x1xf32, #tpu.memory_space<vmem>>, vector<1x1x4x1xf32>
    %166 = vector.shape_cast %165 : vector<1x1x4x1xf32> to vector<4x1xf32>
    %167 = vector.broadcast %166 : vector<4x1xf32> to vector<4x256xf32>
    %168 = arith.mulf %25, %167 : vector<4x256xf32>
    %169 = arith.addf %164, %168 : vector<4x256xf32>
    %c4_107 = arith.constant 4 : index
    %c2_108 = arith.constant 2 : index
    %c0_109 = arith.constant 0 : index
    %c0_110 = arith.constant 0 : index
    %170 = vector.load %arg1[%c4_107, %c2_108, %c0_109, %c0_110] : memref<9x4x4x1xf32, #tpu.memory_space<vmem>>, vector<1x1x4x1xf32>
    %171 = vector.shape_cast %170 : vector<1x1x4x1xf32> to vector<4x1xf32>
    %172 = vector.broadcast %171 : vector<4x1xf32> to vector<4x256xf32>
    %173 = arith.mulf %30, %172 : vector<4x256xf32>
    %174 = arith.addf %169, %173 : vector<4x256xf32>
    %c5_111 = arith.constant 5 : index
    %c2_112 = arith.constant 2 : index
    %c0_113 = arith.constant 0 : index
    %c0_114 = arith.constant 0 : index
    %175 = vector.load %arg1[%c5_111, %c2_112, %c0_113, %c0_114] : memref<9x4x4x1xf32, #tpu.memory_space<vmem>>, vector<1x1x4x1xf32>
    %176 = vector.shape_cast %175 : vector<1x1x4x1xf32> to vector<4x1xf32>
    %177 = vector.broadcast %176 : vector<4x1xf32> to vector<4x256xf32>
    %178 = arith.mulf %36, %177 : vector<4x256xf32>
    %179 = arith.addf %174, %178 : vector<4x256xf32>
    %c6_115 = arith.constant 6 : index
    %c2_116 = arith.constant 2 : index
    %c0_117 = arith.constant 0 : index
    %c0_118 = arith.constant 0 : index
    %180 = vector.load %arg1[%c6_115, %c2_116, %c0_117, %c0_118] : memref<9x4x4x1xf32, #tpu.memory_space<vmem>>, vector<1x1x4x1xf32>
    %181 = vector.shape_cast %180 : vector<1x1x4x1xf32> to vector<4x1xf32>
    %182 = vector.broadcast %181 : vector<4x1xf32> to vector<4x256xf32>
    %183 = arith.mulf %42, %182 : vector<4x256xf32>
    %184 = arith.addf %179, %183 : vector<4x256xf32>
    %c7_119 = arith.constant 7 : index
    %c2_120 = arith.constant 2 : index
    %c0_121 = arith.constant 0 : index
    %c0_122 = arith.constant 0 : index
    %185 = vector.load %arg1[%c7_119, %c2_120, %c0_121, %c0_122] : memref<9x4x4x1xf32, #tpu.memory_space<vmem>>, vector<1x1x4x1xf32>
    %186 = vector.shape_cast %185 : vector<1x1x4x1xf32> to vector<4x1xf32>
    %187 = vector.broadcast %186 : vector<4x1xf32> to vector<4x256xf32>
    %188 = arith.mulf %48, %187 : vector<4x256xf32>
    %189 = arith.addf %184, %188 : vector<4x256xf32>
    %c8_123 = arith.constant 8 : index
    %c2_124 = arith.constant 2 : index
    %c0_125 = arith.constant 0 : index
    %c0_126 = arith.constant 0 : index
    %190 = vector.load %arg1[%c8_123, %c2_124, %c0_125, %c0_126] : memref<9x4x4x1xf32, #tpu.memory_space<vmem>>, vector<1x1x4x1xf32>
    %191 = vector.shape_cast %190 : vector<1x1x4x1xf32> to vector<4x1xf32>
    %192 = vector.broadcast %191 : vector<4x1xf32> to vector<4x256xf32>
    %193 = arith.mulf %54, %192 : vector<4x256xf32>
    %194 = arith.addf %189, %193 : vector<4x256xf32>
    %cst_127 = arith.constant dense<0.000000e+00> : vector<256xf32>
    %195 = vector.multi_reduction <add>, %194, %cst_127 [0] : vector<4x256xf32> to vector<256xf32>
    %c2_128 = arith.constant 2 : index
    %c0_129 = arith.constant 0 : index
    %c0_130 = arith.constant 0 : index
    %196 = vector.load %arg7[%c2_128, %c0_129, %c0_130] : memref<4x2x256xf32, #tpu.memory_space<vmem>>, vector<1x1x256xf32>
    %197 = vector.shape_cast %196 : vector<1x1x256xf32> to vector<256xf32>
    %198 = vector.shape_cast %195 : vector<256xf32> to vector<1x1x256xf32>
    tpu.vector_store %arg7[%c2_128, %c0_129, %c0_130], %198 {strides = array<i32>} : memref<4x2x256xf32, #tpu.memory_space<vmem>>, vector<1x1x256xf32>,
    %c0_131 = arith.constant 0 : index
    %c3_132 = arith.constant 3 : index
    %c0_133 = arith.constant 0 : index
    %c0_134 = arith.constant 0 : index
    %199 = vector.load %arg1[%c0_131, %c3_132, %c0_133, %c0_134] : memref<9x4x4x1xf32, #tpu.memory_space<vmem>>, vector<1x1x4x1xf32>
    %200 = vector.shape_cast %199 : vector<1x1x4x1xf32> to vector<4x1xf32>
    %201 = vector.broadcast %200 : vector<4x1xf32> to vector<4x256xf32>
    %202 = arith.mulf %7, %201 : vector<4x256xf32>
    %c1_135 = arith.constant 1 : index
    %c3_136 = arith.constant 3 : index
    %c0_137 = arith.constant 0 : index
    %c0_138 = arith.constant 0 : index
    %203 = vector.load %arg1[%c1_135, %c3_136, %c0_137, %c0_138] : memref<9x4x4x1xf32, #tpu.memory_space<vmem>>, vector<1x1x4x1xf32>
    %204 = vector.shape_cast %203 : vector<1x1x4x1xf32> to vector<4x1xf32>
    %205 = vector.broadcast %204 : vector<4x1xf32> to vector<4x256xf32>
    %206 = arith.mulf %13, %205 : vector<4x256xf32>
    %207 = arith.addf %202, %206 : vector<4x256xf32>
    %c2_139 = arith.constant 2 : index
    %c3_140 = arith.constant 3 : index
    %c0_141 = arith.constant 0 : index
    %c0_142 = arith.constant 0 : index
    %208 = vector.load %arg1[%c2_139, %c3_140, %c0_141, %c0_142] : memref<9x4x4x1xf32, #tpu.memory_space<vmem>>, vector<1x1x4x1xf32>
    %209 = vector.shape_cast %208 : vector<1x1x4x1xf32> to vector<4x1xf32>
    %210 = vector.broadcast %209 : vector<4x1xf32> to vector<4x256xf32>
    %211 = arith.mulf %19, %210 : vector<4x256xf32>
    %212 = arith.addf %207, %211 : vector<4x256xf32>
    %c3_143 = arith.constant 3 : index
    %c3_144 = arith.constant 3 : index
    %c0_145 = arith.constant 0 : index
    %c0_146 = arith.constant 0 : index
    %213 = vector.load %arg1[%c3_143, %c3_144, %c0_145, %c0_146] : memref<9x4x4x1xf32, #tpu.memory_space<vmem>>, vector<1x1x4x1xf32>
    %214 = vector.shape_cast %213 : vector<1x1x4x1xf32> to vector<4x1xf32>
    %215 = vector.broadcast %214 : vector<4x1xf32> to vector<4x256xf32>
    %216 = arith.mulf %25, %215 : vector<4x256xf32>
    %217 = arith.addf %212, %216 : vector<4x256xf32>
    %c4_147 = arith.constant 4 : index
    %c3_148 = arith.constant 3 : index
    %c0_149 = arith.constant 0 : index
    %c0_150 = arith.constant 0 : index
    %218 = vector.load %arg1[%c4_147, %c3_148, %c0_149, %c0_150] : memref<9x4x4x1xf32, #tpu.memory_space<vmem>>, vector<1x1x4x1xf32>
    %219 = vector.shape_cast %218 : vector<1x1x4x1xf32> to vector<4x1xf32>
    %220 = vector.broadcast %219 : vector<4x1xf32> to vector<4x256xf32>
    %221 = arith.mulf %30, %220 : vector<4x256xf32>
    %222 = arith.addf %217, %221 : vector<4x256xf32>
    %c5_151 = arith.constant 5 : index
    %c3_152 = arith.constant 3 : index
    %c0_153 = arith.constant 0 : index
    %c0_154 = arith.constant 0 : index
    %223 = vector.load %arg1[%c5_151, %c3_152, %c0_153, %c0_154] : memref<9x4x4x1xf32, #tpu.memory_space<vmem>>, vector<1x1x4x1xf32>
    %224 = vector.shape_cast %223 : vector<1x1x4x1xf32> to vector<4x1xf32>
    %225 = vector.broadcast %224 : vector<4x1xf32> to vector<4x256xf32>
    %226 = arith.mulf %36, %225 : vector<4x256xf32>
    %227 = arith.addf %222, %226 : vector<4x256xf32>
    %c6_155 = arith.constant 6 : index
    %c3_156 = arith.constant 3 : index
    %c0_157 = arith.constant 0 : index
    %c0_158 = arith.constant 0 : index
    %228 = vector.load %arg1[%c6_155, %c3_156, %c0_157, %c0_158] : memref<9x4x4x1xf32, #tpu.memory_space<vmem>>, vector<1x1x4x1xf32>
    %229 = vector.shape_cast %228 : vector<1x1x4x1xf32> to vector<4x1xf32>
    %230 = vector.broadcast %229 : vector<4x1xf32> to vector<4x256xf32>
    %231 = arith.mulf %42, %230 : vector<4x256xf32>
    %232 = arith.addf %227, %231 : vector<4x256xf32>
    %c7_159 = arith.constant 7 : index
    %c3_160 = arith.constant 3 : index
    %c0_161 = arith.constant 0 : index
    %c0_162 = arith.constant 0 : index
    %233 = vector.load %arg1[%c7_159, %c3_160, %c0_161, %c0_162] : memref<9x4x4x1xf32, #tpu.memory_space<vmem>>, vector<1x1x4x1xf32>
    %234 = vector.shape_cast %233 : vector<1x1x4x1xf32> to vector<4x1xf32>
    %235 = vector.broadcast %234 : vector<4x1xf32> to vector<4x256xf32>
    %236 = arith.mulf %48, %235 : vector<4x256xf32>
    %237 = arith.addf %232, %236 : vector<4x256xf32>
    %c8_163 = arith.constant 8 : index
    %c3_164 = arith.constant 3 : index
    %c0_165 = arith.constant 0 : index
    %c0_166 = arith.constant 0 : index
    %238 = vector.load %arg1[%c8_163, %c3_164, %c0_165, %c0_166] : memref<9x4x4x1xf32, #tpu.memory_space<vmem>>, vector<1x1x4x1xf32>
    %239 = vector.shape_cast %238 : vector<1x1x4x1xf32> to vector<4x1xf32>
    %240 = vector.broadcast %239 : vector<4x1xf32> to vector<4x256xf32>
    %241 = arith.mulf %54, %240 : vector<4x256xf32>
    %242 = arith.addf %237, %241 : vector<4x256xf32>
    %cst_167 = arith.constant dense<0.000000e+00> : vector<256xf32>
    %243 = vector.multi_reduction <add>, %242, %cst_167 [0] : vector<4x256xf32> to vector<256xf32>
    %c3_168 = arith.constant 3 : index
    %c0_169 = arith.constant 0 : index
    %c0_170 = arith.constant 0 : index
    %244 = vector.load %arg7[%c3_168, %c0_169, %c0_170] : memref<4x2x256xf32, #tpu.memory_space<vmem>>, vector<1x1x256xf32>
    %245 = vector.shape_cast %244 : vector<1x1x256xf32> to vector<256xf32>
    %246 = vector.shape_cast %243 : vector<256xf32> to vector<1x1x256xf32>
    tpu.vector_store %arg7[%c3_168, %c0_169, %c0_170], %246 {strides = array<i32>} : memref<4x2x256xf32, #tpu.memory_space<vmem>>, vector<1x1x256xf32>,
    %c1_171 = arith.constant 1 : index
    %c0_172 = arith.constant 0 : index
    %c0_173 = arith.constant 0 : index
    %247 = vector.load %arg5[%c1_171, %c0_172, %c0_173] : memref<2x4x256xf32, #tpu.memory_space<vmem>>, vector<1x4x256xf32>
    %248 = vector.shape_cast %247 : vector<1x4x256xf32> to vector<4x256xf32>
    %c17_i32_174 = arith.constant 17 : i32
    %249 = tpu.dynamic_rotate %248 by %c17_i32_174 dim 1 : vector<4x256xf32>, i32 -> vector<4x256xf32>
    %c0_175 = arith.constant 0 : index
    %c0_176 = arith.constant 0 : index
    %250 = vector.load %arg4[%c0_175, %c0_176] : memref<9x256xf32, #tpu.memory_space<vmem>>, vector<1x256xf32>
    %251 = vector.shape_cast %250 : vector<1x256xf32> to vector<256xf32>
    %252 = vector.shape_cast %251 : vector<256xf32> to vector<1x256xf32>
    %253 = vector.broadcast %252 : vector<1x256xf32> to vector<4x256xf32>
    %254 = arith.mulf %253, %249 : vector<4x256xf32>
    %c16_i32_177 = arith.constant 16 : i32
    %255 = tpu.dynamic_rotate %248 by %c16_i32_177 dim 1 : vector<4x256xf32>, i32 -> vector<4x256xf32>
    %c1_178 = arith.constant 1 : index
    %c0_179 = arith.constant 0 : index
    %256 = vector.load %arg4[%c1_178, %c0_179] : memref<9x256xf32, #tpu.memory_space<vmem>>, vector<1x256xf32>
    %257 = vector.shape_cast %256 : vector<1x256xf32> to vector<256xf32>
    %258 = vector.shape_cast %257 : vector<256xf32> to vector<1x256xf32>
    %259 = vector.broadcast %258 : vector<1x256xf32> to vector<4x256xf32>
    %260 = arith.mulf %259, %255 : vector<4x256xf32>
    %c15_i32_180 = arith.constant 15 : i32
    %261 = tpu.dynamic_rotate %248 by %c15_i32_180 dim 1 : vector<4x256xf32>, i32 -> vector<4x256xf32>
    %c2_181 = arith.constant 2 : index
    %c0_182 = arith.constant 0 : index
    %262 = vector.load %arg4[%c2_181, %c0_182] : memref<9x256xf32, #tpu.memory_space<vmem>>, vector<1x256xf32>
    %263 = vector.shape_cast %262 : vector<1x256xf32> to vector<256xf32>
    %264 = vector.shape_cast %263 : vector<256xf32> to vector<1x256xf32>
    %265 = vector.broadcast %264 : vector<1x256xf32> to vector<4x256xf32>
    %266 = arith.mulf %265, %261 : vector<4x256xf32>
    %c1_i32_183 = arith.constant 1 : i32
    %267 = tpu.dynamic_rotate %248 by %c1_i32_183 dim 1 : vector<4x256xf32>, i32 -> vector<4x256xf32>
    %c3_184 = arith.constant 3 : index
    %c0_185 = arith.constant 0 : index
    %268 = vector.load %arg4[%c3_184, %c0_185] : memref<9x256xf32, #tpu.memory_space<vmem>>, vector<1x256xf32>
    %269 = vector.shape_cast %268 : vector<1x256xf32> to vector<256xf32>
    %270 = vector.shape_cast %269 : vector<256xf32> to vector<1x256xf32>
    %271 = vector.broadcast %270 : vector<1x256xf32> to vector<4x256xf32>
    %272 = arith.mulf %271, %267 : vector<4x256xf32>
    %c4_186 = arith.constant 4 : index
    %c0_187 = arith.constant 0 : index
    %273 = vector.load %arg4[%c4_186, %c0_187] : memref<9x256xf32, #tpu.memory_space<vmem>>, vector<1x256xf32>
    %274 = vector.shape_cast %273 : vector<1x256xf32> to vector<256xf32>
    %275 = vector.shape_cast %274 : vector<256xf32> to vector<1x256xf32>
    %276 = vector.broadcast %275 : vector<1x256xf32> to vector<4x256xf32>
    %277 = arith.mulf %276, %248 : vector<4x256xf32>
    %c255_i32_188 = arith.constant 255 : i32
    %278 = tpu.dynamic_rotate %248 by %c255_i32_188 dim 1 : vector<4x256xf32>, i32 -> vector<4x256xf32>
    %c5_189 = arith.constant 5 : index
    %c0_190 = arith.constant 0 : index
    %279 = vector.load %arg4[%c5_189, %c0_190] : memref<9x256xf32, #tpu.memory_space<vmem>>, vector<1x256xf32>
    %280 = vector.shape_cast %279 : vector<1x256xf32> to vector<256xf32>
    %281 = vector.shape_cast %280 : vector<256xf32> to vector<1x256xf32>
    %282 = vector.broadcast %281 : vector<1x256xf32> to vector<4x256xf32>
    %283 = arith.mulf %282, %278 : vector<4x256xf32>
    %c241_i32_191 = arith.constant 241 : i32
    %284 = tpu.dynamic_rotate %248 by %c241_i32_191 dim 1 : vector<4x256xf32>, i32 -> vector<4x256xf32>
    %c6_192 = arith.constant 6 : index
    %c0_193 = arith.constant 0 : index
    %285 = vector.load %arg4[%c6_192, %c0_193] : memref<9x256xf32, #tpu.memory_space<vmem>>, vector<1x256xf32>
    %286 = vector.shape_cast %285 : vector<1x256xf32> to vector<256xf32>
    %287 = vector.shape_cast %286 : vector<256xf32> to vector<1x256xf32>
    %288 = vector.broadcast %287 : vector<1x256xf32> to vector<4x256xf32>
    %289 = arith.mulf %288, %284 : vector<4x256xf32>
    %c240_i32_194 = arith.constant 240 : i32
    %290 = tpu.dynamic_rotate %248 by %c240_i32_194 dim 1 : vector<4x256xf32>, i32 -> vector<4x256xf32>
    %c7_195 = arith.constant 7 : index
    %c0_196 = arith.constant 0 : index
    %291 = vector.load %arg4[%c7_195, %c0_196] : memref<9x256xf32, #tpu.memory_space<vmem>>, vector<1x256xf32>
    %292 = vector.shape_cast %291 : vector<1x256xf32> to vector<256xf32>
    %293 = vector.shape_cast %292 : vector<256xf32> to vector<1x256xf32>
    %294 = vector.broadcast %293 : vector<1x256xf32> to vector<4x256xf32>
    %295 = arith.mulf %294, %290 : vector<4x256xf32>
    %c239_i32_197 = arith.constant 239 : i32
    %296 = tpu.dynamic_rotate %248 by %c239_i32_197 dim 1 : vector<4x256xf32>, i32 -> vector<4x256xf32>
    %c8_198 = arith.constant 8 : index
    %c0_199 = arith.constant 0 : index
    %297 = vector.load %arg4[%c8_198, %c0_199] : memref<9x256xf32, #tpu.memory_space<vmem>>, vector<1x256xf32>
    %298 = vector.shape_cast %297 : vector<1x256xf32> to vector<256xf32>
    %299 = vector.shape_cast %298 : vector<256xf32> to vector<1x256xf32>
    %300 = vector.broadcast %299 : vector<1x256xf32> to vector<4x256xf32>
    %301 = arith.mulf %300, %296 : vector<4x256xf32>
    %c0_200 = arith.constant 0 : index
    %c0_201 = arith.constant 0 : index
    %c0_202 = arith.constant 0 : index
    %c0_203 = arith.constant 0 : index
    %302 = vector.load %arg1[%c0_200, %c0_201, %c0_202, %c0_203] : memref<9x4x4x1xf32, #tpu.memory_space<vmem>>, vector<1x1x4x1xf32>
    %303 = vector.shape_cast %302 : vector<1x1x4x1xf32> to vector<4x1xf32>
    %304 = vector.broadcast %303 : vector<4x1xf32> to vector<4x256xf32>
    %305 = arith.mulf %254, %304 : vector<4x256xf32>
    %c1_204 = arith.constant 1 : index
    %c0_205 = arith.constant 0 : index
    %c0_206 = arith.constant 0 : index
    %c0_207 = arith.constant 0 : index
    %306 = vector.load %arg1[%c1_204, %c0_205, %c0_206, %c0_207] : memref<9x4x4x1xf32, #tpu.memory_space<vmem>>, vector<1x1x4x1xf32>
    %307 = vector.shape_cast %306 : vector<1x1x4x1xf32> to vector<4x1xf32>
    %308 = vector.broadcast %307 : vector<4x1xf32> to vector<4x256xf32>
    %309 = arith.mulf %260, %308 : vector<4x256xf32>
    %310 = arith.addf %305, %309 : vector<4x256xf32>
    %c2_208 = arith.constant 2 : index
    %c0_209 = arith.constant 0 : index
    %c0_210 = arith.constant 0 : index
    %c0_211 = arith.constant 0 : index
    %311 = vector.load %arg1[%c2_208, %c0_209, %c0_210, %c0_211] : memref<9x4x4x1xf32, #tpu.memory_space<vmem>>, vector<1x1x4x1xf32>
    %312 = vector.shape_cast %311 : vector<1x1x4x1xf32> to vector<4x1xf32>
    %313 = vector.broadcast %312 : vector<4x1xf32> to vector<4x256xf32>
    %314 = arith.mulf %266, %313 : vector<4x256xf32>
    %315 = arith.addf %310, %314 : vector<4x256xf32>
    %c3_212 = arith.constant 3 : index
    %c0_213 = arith.constant 0 : index
    %c0_214 = arith.constant 0 : index
    %c0_215 = arith.constant 0 : index
    %316 = vector.load %arg1[%c3_212, %c0_213, %c0_214, %c0_215] : memref<9x4x4x1xf32, #tpu.memory_space<vmem>>, vector<1x1x4x1xf32>
    %317 = vector.shape_cast %316 : vector<1x1x4x1xf32> to vector<4x1xf32>
    %318 = vector.broadcast %317 : vector<4x1xf32> to vector<4x256xf32>
    %319 = arith.mulf %272, %318 : vector<4x256xf32>
    %320 = arith.addf %315, %319 : vector<4x256xf32>
    %c4_216 = arith.constant 4 : index
    %c0_217 = arith.constant 0 : index
    %c0_218 = arith.constant 0 : index
    %c0_219 = arith.constant 0 : index
    %321 = vector.load %arg1[%c4_216, %c0_217, %c0_218, %c0_219] : memref<9x4x4x1xf32, #tpu.memory_space<vmem>>, vector<1x1x4x1xf32>
    %322 = vector.shape_cast %321 : vector<1x1x4x1xf32> to vector<4x1xf32>
    %323 = vector.broadcast %322 : vector<4x1xf32> to vector<4x256xf32>
    %324 = arith.mulf %277, %323 : vector<4x256xf32>
    %325 = arith.addf %320, %324 : vector<4x256xf32>
    %c5_220 = arith.constant 5 : index
    %c0_221 = arith.constant 0 : index
    %c0_222 = arith.constant 0 : index
    %c0_223 = arith.constant 0 : index
    %326 = vector.load %arg1[%c5_220, %c0_221, %c0_222, %c0_223] : memref<9x4x4x1xf32, #tpu.memory_space<vmem>>, vector<1x1x4x1xf32>
    %327 = vector.shape_cast %326 : vector<1x1x4x1xf32> to vector<4x1xf32>
    %328 = vector.broadcast %327 : vector<4x1xf32> to vector<4x256xf32>
    %329 = arith.mulf %283, %328 : vector<4x256xf32>
    %330 = arith.addf %325, %329 : vector<4x256xf32>
    %c6_224 = arith.constant 6 : index
    %c0_225 = arith.constant 0 : index
    %c0_226 = arith.constant 0 : index
    %c0_227 = arith.constant 0 : index
    %331 = vector.load %arg1[%c6_224, %c0_225, %c0_226, %c0_227] : memref<9x4x4x1xf32, #tpu.memory_space<vmem>>, vector<1x1x4x1xf32>
    %332 = vector.shape_cast %331 : vector<1x1x4x1xf32> to vector<4x1xf32>
    %333 = vector.broadcast %332 : vector<4x1xf32> to vector<4x256xf32>
    %334 = arith.mulf %289, %333 : vector<4x256xf32>
    %335 = arith.addf %330, %334 : vector<4x256xf32>
    %c7_228 = arith.constant 7 : index
    %c0_229 = arith.constant 0 : index
    %c0_230 = arith.constant 0 : index
    %c0_231 = arith.constant 0 : index
    %336 = vector.load %arg1[%c7_228, %c0_229, %c0_230, %c0_231] : memref<9x4x4x1xf32, #tpu.memory_space<vmem>>, vector<1x1x4x1xf32>
    %337 = vector.shape_cast %336 : vector<1x1x4x1xf32> to vector<4x1xf32>
    %338 = vector.broadcast %337 : vector<4x1xf32> to vector<4x256xf32>
    %339 = arith.mulf %295, %338 : vector<4x256xf32>
    %340 = arith.addf %335, %339 : vector<4x256xf32>
    %c8_232 = arith.constant 8 : index
    %c0_233 = arith.constant 0 : index
    %c0_234 = arith.constant 0 : index
    %c0_235 = arith.constant 0 : index
    %341 = vector.load %arg1[%c8_232, %c0_233, %c0_234, %c0_235] : memref<9x4x4x1xf32, #tpu.memory_space<vmem>>, vector<1x1x4x1xf32>
    %342 = vector.shape_cast %341 : vector<1x1x4x1xf32> to vector<4x1xf32>
    %343 = vector.broadcast %342 : vector<4x1xf32> to vector<4x256xf32>
    %344 = arith.mulf %301, %343 : vector<4x256xf32>
    %345 = arith.addf %340, %344 : vector<4x256xf32>
    %cst_236 = arith.constant dense<0.000000e+00> : vector<256xf32>
    %346 = vector.multi_reduction <add>, %345, %cst_236 [0] : vector<4x256xf32> to vector<256xf32>
    %c0_237 = arith.constant 0 : index
    %c1_238 = arith.constant 1 : index
    %c0_239 = arith.constant 0 : index
    %347 = vector.load %arg7[%c0_237, %c1_238, %c0_239] : memref<4x2x256xf32, #tpu.memory_space<vmem>>, vector<1x1x256xf32>
    %348 = vector.shape_cast %347 : vector<1x1x256xf32> to vector<256xf32>
    %349 = vector.shape_cast %346 : vector<256xf32> to vector<1x1x256xf32>
    tpu.vector_store %arg7[%c0_237, %c1_238, %c0_239], %349 {strides = array<i32>} : memref<4x2x256xf32, #tpu.memory_space<vmem>>, vector<1x1x256xf32>,
    %c0_240 = arith.constant 0 : index
    %c1_241 = arith.constant 1 : index
    %c0_242 = arith.constant 0 : index
    %c0_243 = arith.constant 0 : index
    %350 = vector.load %arg1[%c0_240, %c1_241, %c0_242, %c0_243] : memref<9x4x4x1xf32, #tpu.memory_space<vmem>>, vector<1x1x4x1xf32>
    %351 = vector.shape_cast %350 : vector<1x1x4x1xf32> to vector<4x1xf32>
    %352 = vector.broadcast %351 : vector<4x1xf32> to vector<4x256xf32>
    %353 = arith.mulf %254, %352 : vector<4x256xf32>
    %c1_244 = arith.constant 1 : index
    %c1_245 = arith.constant 1 : index
    %c0_246 = arith.constant 0 : index
    %c0_247 = arith.constant 0 : index
    %354 = vector.load %arg1[%c1_244, %c1_245, %c0_246, %c0_247] : memref<9x4x4x1xf32, #tpu.memory_space<vmem>>, vector<1x1x4x1xf32>
    %355 = vector.shape_cast %354 : vector<1x1x4x1xf32> to vector<4x1xf32>
    %356 = vector.broadcast %355 : vector<4x1xf32> to vector<4x256xf32>
    %357 = arith.mulf %260, %356 : vector<4x256xf32>
    %358 = arith.addf %353, %357 : vector<4x256xf32>
    %c2_248 = arith.constant 2 : index
    %c1_249 = arith.constant 1 : index
    %c0_250 = arith.constant 0 : index
    %c0_251 = arith.constant 0 : index
    %359 = vector.load %arg1[%c2_248, %c1_249, %c0_250, %c0_251] : memref<9x4x4x1xf32, #tpu.memory_space<vmem>>, vector<1x1x4x1xf32>
    %360 = vector.shape_cast %359 : vector<1x1x4x1xf32> to vector<4x1xf32>
    %361 = vector.broadcast %360 : vector<4x1xf32> to vector<4x256xf32>
    %362 = arith.mulf %266, %361 : vector<4x256xf32>
    %363 = arith.addf %358, %362 : vector<4x256xf32>
    %c3_252 = arith.constant 3 : index
    %c1_253 = arith.constant 1 : index
    %c0_254 = arith.constant 0 : index
    %c0_255 = arith.constant 0 : index
    %364 = vector.load %arg1[%c3_252, %c1_253, %c0_254, %c0_255] : memref<9x4x4x1xf32, #tpu.memory_space<vmem>>, vector<1x1x4x1xf32>
    %365 = vector.shape_cast %364 : vector<1x1x4x1xf32> to vector<4x1xf32>
    %366 = vector.broadcast %365 : vector<4x1xf32> to vector<4x256xf32>
    %367 = arith.mulf %272, %366 : vector<4x256xf32>
    %368 = arith.addf %363, %367 : vector<4x256xf32>
    %c4_256 = arith.constant 4 : index
    %c1_257 = arith.constant 1 : index
    %c0_258 = arith.constant 0 : index
    %c0_259 = arith.constant 0 : index
    %369 = vector.load %arg1[%c4_256, %c1_257, %c0_258, %c0_259] : memref<9x4x4x1xf32, #tpu.memory_space<vmem>>, vector<1x1x4x1xf32>
    %370 = vector.shape_cast %369 : vector<1x1x4x1xf32> to vector<4x1xf32>
    %371 = vector.broadcast %370 : vector<4x1xf32> to vector<4x256xf32>
    %372 = arith.mulf %277, %371 : vector<4x256xf32>
    %373 = arith.addf %368, %372 : vector<4x256xf32>
    %c5_260 = arith.constant 5 : index
    %c1_261 = arith.constant 1 : index
    %c0_262 = arith.constant 0 : index
    %c0_263 = arith.constant 0 : index
    %374 = vector.load %arg1[%c5_260, %c1_261, %c0_262, %c0_263] : memref<9x4x4x1xf32, #tpu.memory_space<vmem>>, vector<1x1x4x1xf32>
    %375 = vector.shape_cast %374 : vector<1x1x4x1xf32> to vector<4x1xf32>
    %376 = vector.broadcast %375 : vector<4x1xf32> to vector<4x256xf32>
    %377 = arith.mulf %283, %376 : vector<4x256xf32>
    %378 = arith.addf %373, %377 : vector<4x256xf32>
    %c6_264 = arith.constant 6 : index
    %c1_265 = arith.constant 1 : index
    %c0_266 = arith.constant 0 : index
    %c0_267 = arith.constant 0 : index
    %379 = vector.load %arg1[%c6_264, %c1_265, %c0_266, %c0_267] : memref<9x4x4x1xf32, #tpu.memory_space<vmem>>, vector<1x1x4x1xf32>
    %380 = vector.shape_cast %379 : vector<1x1x4x1xf32> to vector<4x1xf32>
    %381 = vector.broadcast %380 : vector<4x1xf32> to vector<4x256xf32>
    %382 = arith.mulf %289, %381 : vector<4x256xf32>
    %383 = arith.addf %378, %382 : vector<4x256xf32>
    %c7_268 = arith.constant 7 : index
    %c1_269 = arith.constant 1 : index
    %c0_270 = arith.constant 0 : index
    %c0_271 = arith.constant 0 : index
    %384 = vector.load %arg1[%c7_268, %c1_269, %c0_270, %c0_271] : memref<9x4x4x1xf32, #tpu.memory_space<vmem>>, vector<1x1x4x1xf32>
    %385 = vector.shape_cast %384 : vector<1x1x4x1xf32> to vector<4x1xf32>
    %386 = vector.broadcast %385 : vector<4x1xf32> to vector<4x256xf32>
    %387 = arith.mulf %295, %386 : vector<4x256xf32>
    %388 = arith.addf %383, %387 : vector<4x256xf32>
    %c8_272 = arith.constant 8 : index
    %c1_273 = arith.constant 1 : index
    %c0_274 = arith.constant 0 : index
    %c0_275 = arith.constant 0 : index
    %389 = vector.load %arg1[%c8_272, %c1_273, %c0_274, %c0_275] : memref<9x4x4x1xf32, #tpu.memory_space<vmem>>, vector<1x1x4x1xf32>
    %390 = vector.shape_cast %389 : vector<1x1x4x1xf32> to vector<4x1xf32>
    %391 = vector.broadcast %390 : vector<4x1xf32> to vector<4x256xf32>
    %392 = arith.mulf %301, %391 : vector<4x256xf32>
    %393 = arith.addf %388, %392 : vector<4x256xf32>
    %cst_276 = arith.constant dense<0.000000e+00> : vector<256xf32>
    %394 = vector.multi_reduction <add>, %393, %cst_276 [0] : vector<4x256xf32> to vector<256xf32>
    %c1_277 = arith.constant 1 : index
    %c1_278 = arith.constant 1 : index
    %c0_279 = arith.constant 0 : index
    %395 = vector.load %arg7[%c1_277, %c1_278, %c0_279] : memref<4x2x256xf32, #tpu.memory_space<vmem>>, vector<1x1x256xf32>
    %396 = vector.shape_cast %395 : vector<1x1x256xf32> to vector<256xf32>
    %397 = vector.shape_cast %394 : vector<256xf32> to vector<1x1x256xf32>
    tpu.vector_store %arg7[%c1_277, %c1_278, %c0_279], %397 {strides = array<i32>} : memref<4x2x256xf32, #tpu.memory_space<vmem>>, vector<1x1x256xf32>,
    %c0_280 = arith.constant 0 : index
    %c2_281 = arith.constant 2 : index
    %c0_282 = arith.constant 0 : index
    %c0_283 = arith.constant 0 : index
    %398 = vector.load %arg1[%c0_280, %c2_281, %c0_282, %c0_283] : memref<9x4x4x1xf32, #tpu.memory_space<vmem>>, vector<1x1x4x1xf32>
    %399 = vector.shape_cast %398 : vector<1x1x4x1xf32> to vector<4x1xf32>
    %400 = vector.broadcast %399 : vector<4x1xf32> to vector<4x256xf32>
    %401 = arith.mulf %254, %400 : vector<4x256xf32>
    %c1_284 = arith.constant 1 : index
    %c2_285 = arith.constant 2 : index
    %c0_286 = arith.constant 0 : index
    %c0_287 = arith.constant 0 : index
    %402 = vector.load %arg1[%c1_284, %c2_285, %c0_286, %c0_287] : memref<9x4x4x1xf32, #tpu.memory_space<vmem>>, vector<1x1x4x1xf32>
    %403 = vector.shape_cast %402 : vector<1x1x4x1xf32> to vector<4x1xf32>
    %404 = vector.broadcast %403 : vector<4x1xf32> to vector<4x256xf32>
    %405 = arith.mulf %260, %404 : vector<4x256xf32>
    %406 = arith.addf %401, %405 : vector<4x256xf32>
    %c2_288 = arith.constant 2 : index
    %c2_289 = arith.constant 2 : index
    %c0_290 = arith.constant 0 : index
    %c0_291 = arith.constant 0 : index
    %407 = vector.load %arg1[%c2_288, %c2_289, %c0_290, %c0_291] : memref<9x4x4x1xf32, #tpu.memory_space<vmem>>, vector<1x1x4x1xf32>
    %408 = vector.shape_cast %407 : vector<1x1x4x1xf32> to vector<4x1xf32>
    %409 = vector.broadcast %408 : vector<4x1xf32> to vector<4x256xf32>
    %410 = arith.mulf %266, %409 : vector<4x256xf32>
    %411 = arith.addf %406, %410 : vector<4x256xf32>
    %c3_292 = arith.constant 3 : index
    %c2_293 = arith.constant 2 : index
    %c0_294 = arith.constant 0 : index
    %c0_295 = arith.constant 0 : index
    %412 = vector.load %arg1[%c3_292, %c2_293, %c0_294, %c0_295] : memref<9x4x4x1xf32, #tpu.memory_space<vmem>>, vector<1x1x4x1xf32>
    %413 = vector.shape_cast %412 : vector<1x1x4x1xf32> to vector<4x1xf32>
    %414 = vector.broadcast %413 : vector<4x1xf32> to vector<4x256xf32>
    %415 = arith.mulf %272, %414 : vector<4x256xf32>
    %416 = arith.addf %411, %415 : vector<4x256xf32>
    %c4_296 = arith.constant 4 : index
    %c2_297 = arith.constant 2 : index
    %c0_298 = arith.constant 0 : index
    %c0_299 = arith.constant 0 : index
    %417 = vector.load %arg1[%c4_296, %c2_297, %c0_298, %c0_299] : memref<9x4x4x1xf32, #tpu.memory_space<vmem>>, vector<1x1x4x1xf32>
    %418 = vector.shape_cast %417 : vector<1x1x4x1xf32> to vector<4x1xf32>
    %419 = vector.broadcast %418 : vector<4x1xf32> to vector<4x256xf32>
    %420 = arith.mulf %277, %419 : vector<4x256xf32>
    %421 = arith.addf %416, %420 : vector<4x256xf32>
    %c5_300 = arith.constant 5 : index
    %c2_301 = arith.constant 2 : index
    %c0_302 = arith.constant 0 : index
    %c0_303 = arith.constant 0 : index
    %422 = vector.load %arg1[%c5_300, %c2_301, %c0_302, %c0_303] : memref<9x4x4x1xf32, #tpu.memory_space<vmem>>, vector<1x1x4x1xf32>
    %423 = vector.shape_cast %422 : vector<1x1x4x1xf32> to vector<4x1xf32>
    %424 = vector.broadcast %423 : vector<4x1xf32> to vector<4x256xf32>
    %425 = arith.mulf %283, %424 : vector<4x256xf32>
    %426 = arith.addf %421, %425 : vector<4x256xf32>
    %c6_304 = arith.constant 6 : index
    %c2_305 = arith.constant 2 : index
    %c0_306 = arith.constant 0 : index
    %c0_307 = arith.constant 0 : index
    %427 = vector.load %arg1[%c6_304, %c2_305, %c0_306, %c0_307] : memref<9x4x4x1xf32, #tpu.memory_space<vmem>>, vector<1x1x4x1xf32>
    %428 = vector.shape_cast %427 : vector<1x1x4x1xf32> to vector<4x1xf32>
    %429 = vector.broadcast %428 : vector<4x1xf32> to vector<4x256xf32>
    %430 = arith.mulf %289, %429 : vector<4x256xf32>
    %431 = arith.addf %426, %430 : vector<4x256xf32>
    %c7_308 = arith.constant 7 : index
    %c2_309 = arith.constant 2 : index
    %c0_310 = arith.constant 0 : index
    %c0_311 = arith.constant 0 : index
    %432 = vector.load %arg1[%c7_308, %c2_309, %c0_310, %c0_311] : memref<9x4x4x1xf32, #tpu.memory_space<vmem>>, vector<1x1x4x1xf32>
    %433 = vector.shape_cast %432 : vector<1x1x4x1xf32> to vector<4x1xf32>
    %434 = vector.broadcast %433 : vector<4x1xf32> to vector<4x256xf32>
    %435 = arith.mulf %295, %434 : vector<4x256xf32>
    %436 = arith.addf %431, %435 : vector<4x256xf32>
    %c8_312 = arith.constant 8 : index
    %c2_313 = arith.constant 2 : index
    %c0_314 = arith.constant 0 : index
    %c0_315 = arith.constant 0 : index
    %437 = vector.load %arg1[%c8_312, %c2_313, %c0_314, %c0_315] : memref<9x4x4x1xf32, #tpu.memory_space<vmem>>, vector<1x1x4x1xf32>
    %438 = vector.shape_cast %437 : vector<1x1x4x1xf32> to vector<4x1xf32>
    %439 = vector.broadcast %438 : vector<4x1xf32> to vector<4x256xf32>
    %440 = arith.mulf %301, %439 : vector<4x256xf32>
    %441 = arith.addf %436, %440 : vector<4x256xf32>
    %cst_316 = arith.constant dense<0.000000e+00> : vector<256xf32>
    %442 = vector.multi_reduction <add>, %441, %cst_316 [0] : vector<4x256xf32> to vector<256xf32>
    %c2_317 = arith.constant 2 : index
    %c1_318 = arith.constant 1 : index
    %c0_319 = arith.constant 0 : index
    %443 = vector.load %arg7[%c2_317, %c1_318, %c0_319] : memref<4x2x256xf32, #tpu.memory_space<vmem>>, vector<1x1x256xf32>
    %444 = vector.shape_cast %443 : vector<1x1x256xf32> to vector<256xf32>
    %445 = vector.shape_cast %442 : vector<256xf32> to vector<1x1x256xf32>
    tpu.vector_store %arg7[%c2_317, %c1_318, %c0_319], %445 {strides = array<i32>} : memref<4x2x256xf32, #tpu.memory_space<vmem>>, vector<1x1x256xf32>,
    %c0_320 = arith.constant 0 : index
    %c3_321 = arith.constant 3 : index
    %c0_322 = arith.constant 0 : index
    %c0_323 = arith.constant 0 : index
    %446 = vector.load %arg1[%c0_320, %c3_321, %c0_322, %c0_323] : memref<9x4x4x1xf32, #tpu.memory_space<vmem>>, vector<1x1x4x1xf32>
    %447 = vector.shape_cast %446 : vector<1x1x4x1xf32> to vector<4x1xf32>
    %448 = vector.broadcast %447 : vector<4x1xf32> to vector<4x256xf32>
    %449 = arith.mulf %254, %448 : vector<4x256xf32>
    %c1_324 = arith.constant 1 : index
    %c3_325 = arith.constant 3 : index
    %c0_326 = arith.constant 0 : index
    %c0_327 = arith.constant 0 : index
    %450 = vector.load %arg1[%c1_324, %c3_325, %c0_326, %c0_327] : memref<9x4x4x1xf32, #tpu.memory_space<vmem>>, vector<1x1x4x1xf32>
    %451 = vector.shape_cast %450 : vector<1x1x4x1xf32> to vector<4x1xf32>
    %452 = vector.broadcast %451 : vector<4x1xf32> to vector<4x256xf32>
    %453 = arith.mulf %260, %452 : vector<4x256xf32>
    %454 = arith.addf %449, %453 : vector<4x256xf32>
    %c2_328 = arith.constant 2 : index
    %c3_329 = arith.constant 3 : index
    %c0_330 = arith.constant 0 : index
    %c0_331 = arith.constant 0 : index
    %455 = vector.load %arg1[%c2_328, %c3_329, %c0_330, %c0_331] : memref<9x4x4x1xf32, #tpu.memory_space<vmem>>, vector<1x1x4x1xf32>
    %456 = vector.shape_cast %455 : vector<1x1x4x1xf32> to vector<4x1xf32>
    %457 = vector.broadcast %456 : vector<4x1xf32> to vector<4x256xf32>
    %458 = arith.mulf %266, %457 : vector<4x256xf32>
    %459 = arith.addf %454, %458 : vector<4x256xf32>
    %c3_332 = arith.constant 3 : index
    %c3_333 = arith.constant 3 : index
    %c0_334 = arith.constant 0 : index
    %c0_335 = arith.constant 0 : index
    %460 = vector.load %arg1[%c3_332, %c3_333, %c0_334, %c0_335] : memref<9x4x4x1xf32, #tpu.memory_space<vmem>>, vector<1x1x4x1xf32>
    %461 = vector.shape_cast %460 : vector<1x1x4x1xf32> to vector<4x1xf32>
    %462 = vector.broadcast %461 : vector<4x1xf32> to vector<4x256xf32>
    %463 = arith.mulf %272, %462 : vector<4x256xf32>
    %464 = arith.addf %459, %463 : vector<4x256xf32>
    %c4_336 = arith.constant 4 : index
    %c3_337 = arith.constant 3 : index
    %c0_338 = arith.constant 0 : index
    %c0_339 = arith.constant 0 : index
    %465 = vector.load %arg1[%c4_336, %c3_337, %c0_338, %c0_339] : memref<9x4x4x1xf32, #tpu.memory_space<vmem>>, vector<1x1x4x1xf32>
    %466 = vector.shape_cast %465 : vector<1x1x4x1xf32> to vector<4x1xf32>
    %467 = vector.broadcast %466 : vector<4x1xf32> to vector<4x256xf32>
    %468 = arith.mulf %277, %467 : vector<4x256xf32>
    %469 = arith.addf %464, %468 : vector<4x256xf32>
    %c5_340 = arith.constant 5 : index
    %c3_341 = arith.constant 3 : index
    %c0_342 = arith.constant 0 : index
    %c0_343 = arith.constant 0 : index
    %470 = vector.load %arg1[%c5_340, %c3_341, %c0_342, %c0_343] : memref<9x4x4x1xf32, #tpu.memory_space<vmem>>, vector<1x1x4x1xf32>
    %471 = vector.shape_cast %470 : vector<1x1x4x1xf32> to vector<4x1xf32>
    %472 = vector.broadcast %471 : vector<4x1xf32> to vector<4x256xf32>
    %473 = arith.mulf %283, %472 : vector<4x256xf32>
    %474 = arith.addf %469, %473 : vector<4x256xf32>
    %c6_344 = arith.constant 6 : index
    %c3_345 = arith.constant 3 : index
    %c0_346 = arith.constant 0 : index
    %c0_347 = arith.constant 0 : index
    %475 = vector.load %arg1[%c6_344, %c3_345, %c0_346, %c0_347] : memref<9x4x4x1xf32, #tpu.memory_space<vmem>>, vector<1x1x4x1xf32>
    %476 = vector.shape_cast %475 : vector<1x1x4x1xf32> to vector<4x1xf32>
    %477 = vector.broadcast %476 : vector<4x1xf32> to vector<4x256xf32>
    %478 = arith.mulf %289, %477 : vector<4x256xf32>
    %479 = arith.addf %474, %478 : vector<4x256xf32>
    %c7_348 = arith.constant 7 : index
    %c3_349 = arith.constant 3 : index
    %c0_350 = arith.constant 0 : index
    %c0_351 = arith.constant 0 : index
    %480 = vector.load %arg1[%c7_348, %c3_349, %c0_350, %c0_351] : memref<9x4x4x1xf32, #tpu.memory_space<vmem>>, vector<1x1x4x1xf32>
    %481 = vector.shape_cast %480 : vector<1x1x4x1xf32> to vector<4x1xf32>
    %482 = vector.broadcast %481 : vector<4x1xf32> to vector<4x256xf32>
    %483 = arith.mulf %295, %482 : vector<4x256xf32>
    %484 = arith.addf %479, %483 : vector<4x256xf32>
    %c8_352 = arith.constant 8 : index
    %c3_353 = arith.constant 3 : index
    %c0_354 = arith.constant 0 : index
    %c0_355 = arith.constant 0 : index
    %485 = vector.load %arg1[%c8_352, %c3_353, %c0_354, %c0_355] : memref<9x4x4x1xf32, #tpu.memory_space<vmem>>, vector<1x1x4x1xf32>
    %486 = vector.shape_cast %485 : vector<1x1x4x1xf32> to vector<4x1xf32>
    %487 = vector.broadcast %486 : vector<4x1xf32> to vector<4x256xf32>
    %488 = arith.mulf %301, %487 : vector<4x256xf32>
    %489 = arith.addf %484, %488 : vector<4x256xf32>
    %cst_356 = arith.constant dense<0.000000e+00> : vector<256xf32>
    %490 = vector.multi_reduction <add>, %489, %cst_356 [0] : vector<4x256xf32> to vector<256xf32>
    %c3_357 = arith.constant 3 : index
    %c1_358 = arith.constant 1 : index
    %c0_359 = arith.constant 0 : index
    %491 = vector.load %arg7[%c3_357, %c1_358, %c0_359] : memref<4x2x256xf32, #tpu.memory_space<vmem>>, vector<1x1x256xf32>
    %492 = vector.shape_cast %491 : vector<1x1x256xf32> to vector<256xf32>
    %493 = vector.shape_cast %490 : vector<256xf32> to vector<1x1x256xf32>
    tpu.vector_store %arg7[%c3_357, %c1_358, %c0_359], %493 {strides = array<i32>} : memref<4x2x256xf32, #tpu.memory_space<vmem>>, vector<1x1x256xf32>,
    %c0_360 = arith.constant 0 : index
    %494 = memref.load %arg3[%c0_360] : memref<8xi32, #tpu.memory_space<smem>>
    %495 = arith.index_cast %494 : i32 to index
    %c0_361 = arith.constant 0 : index
    %c0_362 = arith.constant 0 : index
    %496 = vector.load %arg7[%495, %c0_361, %c0_362] : memref<4x2x256xf32, #tpu.memory_space<vmem>>, vector<1x2x256xf32>
    %497 = vector.shape_cast %496 : vector<1x2x256xf32> to vector<2x256xf32>
    %c0_363 = arith.constant 0 : index
    %498 = memref.load %arg2[%c0_363] : memref<8xf32, #tpu.memory_space<smem>>
    %499 = vector.extract_strided_slice %497 {offsets = [0, 0], sizes = [1, 256], strides = [1, 1]} : vector<2x256xf32> to vector<1x256xf32>
    %500 = vector.shape_cast %499 : vector<1x256xf32> to vector<256xf32>
    %501 = vector.broadcast %498 : f32 to vector<256xf32>
    %502 = arith.mulf %501, %500 : vector<256xf32>
    %c0_364 = arith.constant 0 : index
    %c0_365 = arith.constant 0 : index
    %c0_366 = arith.constant 0 : index
    %503 = vector.load %arg6[%c0_364, %c0_365, %c0_366] : memref<2x8x256xf32, #tpu.memory_space<vmem>>, vector<1x1x256xf32>
    %504 = vector.shape_cast %503 : vector<1x1x256xf32> to vector<256xf32>
    %505 = vector.shape_cast %502 : vector<256xf32> to vector<1x1x256xf32>
    tpu.vector_store %arg6[%c0_364, %c0_365, %c0_366], %505 {strides = array<i32>} : memref<2x8x256xf32, #tpu.memory_space<vmem>>, vector<1x1x256xf32>,
    %506 = vector.extract_strided_slice %497 {offsets = [1, 0], sizes = [1, 256], strides = [1, 1]} : vector<2x256xf32> to vector<1x256xf32>
    %507 = vector.shape_cast %506 : vector<1x256xf32> to vector<256xf32>
    %508 = vector.broadcast %498 : f32 to vector<256xf32>
    %509 = arith.mulf %508, %507 : vector<256xf32>
    %c1_367 = arith.constant 1 : index
    %c0_368 = arith.constant 0 : index
    %c0_369 = arith.constant 0 : index
    %510 = vector.load %arg6[%c1_367, %c0_368, %c0_369] : memref<2x8x256xf32, #tpu.memory_space<vmem>>, vector<1x1x256xf32>
    %511 = vector.shape_cast %510 : vector<1x1x256xf32> to vector<256xf32>
    %512 = vector.shape_cast %509 : vector<256xf32> to vector<1x1x256xf32>
    tpu.vector_store %arg6[%c1_367, %c0_368, %c0_369], %512 {strides = array<i32>} : memref<2x8x256xf32, #tpu.memory_space<vmem>>, vector<1x1x256xf32>,
    %c1_370 = arith.constant 1 : index
    %513 = memref.load %arg3[%c1_370] : memref<8xi32, #tpu.memory_space<smem>>
    %514 = arith.index_cast %513 : i32 to index
    %c0_371 = arith.constant 0 : index
    %c0_372 = arith.constant 0 : index
    %515 = vector.load %arg7[%514, %c0_371, %c0_372] : memref<4x2x256xf32, #tpu.memory_space<vmem>>, vector<1x2x256xf32>
    %516 = vector.shape_cast %515 : vector<1x2x256xf32> to vector<2x256xf32>
    %c1_373 = arith.constant 1 : index
    %517 = memref.load %arg2[%c1_373] : memref<8xf32, #tpu.memory_space<smem>>
    %518 = vector.extract_strided_slice %516 {offsets = [0, 0], sizes = [1, 256], strides = [1, 1]} : vector<2x256xf32> to vector<1x256xf32>
    %519 = vector.shape_cast %518 : vector<1x256xf32> to vector<256xf32>
    %520 = vector.broadcast %517 : f32 to vector<256xf32>
    %521 = arith.mulf %520, %519 : vector<256xf32>
    %c0_374 = arith.constant 0 : index
    %c1_375 = arith.constant 1 : index
    %c0_376 = arith.constant 0 : index
    %522 = vector.load %arg6[%c0_374, %c1_375, %c0_376] : memref<2x8x256xf32, #tpu.memory_space<vmem>>, vector<1x1x256xf32>
    %523 = vector.shape_cast %522 : vector<1x1x256xf32> to vector<256xf32>
    %524 = vector.shape_cast %521 : vector<256xf32> to vector<1x1x256xf32>
    tpu.vector_store %arg6[%c0_374, %c1_375, %c0_376], %524 {strides = array<i32>} : memref<2x8x256xf32, #tpu.memory_space<vmem>>, vector<1x1x256xf32>,
    %525 = vector.extract_strided_slice %516 {offsets = [1, 0], sizes = [1, 256], strides = [1, 1]} : vector<2x256xf32> to vector<1x256xf32>
    %526 = vector.shape_cast %525 : vector<1x256xf32> to vector<256xf32>
    %527 = vector.broadcast %517 : f32 to vector<256xf32>
    %528 = arith.mulf %527, %526 : vector<256xf32>
    %c1_377 = arith.constant 1 : index
    %c1_378 = arith.constant 1 : index
    %c0_379 = arith.constant 0 : index
    %529 = vector.load %arg6[%c1_377, %c1_378, %c0_379] : memref<2x8x256xf32, #tpu.memory_space<vmem>>, vector<1x1x256xf32>
    %530 = vector.shape_cast %529 : vector<1x1x256xf32> to vector<256xf32>
    %531 = vector.shape_cast %528 : vector<256xf32> to vector<1x1x256xf32>
    tpu.vector_store %arg6[%c1_377, %c1_378, %c0_379], %531 {strides = array<i32>} : memref<2x8x256xf32, #tpu.memory_space<vmem>>, vector<1x1x256xf32>,
    %c2_380 = arith.constant 2 : index
    %532 = memref.load %arg3[%c2_380] : memref<8xi32, #tpu.memory_space<smem>>
    %533 = arith.index_cast %532 : i32 to index
    %c0_381 = arith.constant 0 : index
    %c0_382 = arith.constant 0 : index
    %534 = vector.load %arg7[%533, %c0_381, %c0_382] : memref<4x2x256xf32, #tpu.memory_space<vmem>>, vector<1x2x256xf32>
    %535 = vector.shape_cast %534 : vector<1x2x256xf32> to vector<2x256xf32>
    %c2_383 = arith.constant 2 : index
    %536 = memref.load %arg2[%c2_383] : memref<8xf32, #tpu.memory_space<smem>>
    %537 = vector.extract_strided_slice %535 {offsets = [0, 0], sizes = [1, 256], strides = [1, 1]} : vector<2x256xf32> to vector<1x256xf32>
    %538 = vector.shape_cast %537 : vector<1x256xf32> to vector<256xf32>
    %539 = vector.broadcast %536 : f32 to vector<256xf32>
    %540 = arith.mulf %539, %538 : vector<256xf32>
    %c0_384 = arith.constant 0 : index
    %c2_385 = arith.constant 2 : index
    %c0_386 = arith.constant 0 : index
    %541 = vector.load %arg6[%c0_384, %c2_385, %c0_386] : memref<2x8x256xf32, #tpu.memory_space<vmem>>, vector<1x1x256xf32>
    %542 = vector.shape_cast %541 : vector<1x1x256xf32> to vector<256xf32>
    %543 = vector.shape_cast %540 : vector<256xf32> to vector<1x1x256xf32>
    tpu.vector_store %arg6[%c0_384, %c2_385, %c0_386], %543 {strides = array<i32>} : memref<2x8x256xf32, #tpu.memory_space<vmem>>, vector<1x1x256xf32>,
    %544 = vector.extract_strided_slice %535 {offsets = [1, 0], sizes = [1, 256], strides = [1, 1]} : vector<2x256xf32> to vector<1x256xf32>
    %545 = vector.shape_cast %544 : vector<1x256xf32> to vector<256xf32>
    %546 = vector.broadcast %536 : f32 to vector<256xf32>
    %547 = arith.mulf %546, %545 : vector<256xf32>
    %c1_387 = arith.constant 1 : index
    %c2_388 = arith.constant 2 : index
    %c0_389 = arith.constant 0 : index
    %548 = vector.load %arg6[%c1_387, %c2_388, %c0_389] : memref<2x8x256xf32, #tpu.memory_space<vmem>>, vector<1x1x256xf32>
    %549 = vector.shape_cast %548 : vector<1x1x256xf32> to vector<256xf32>
    %550 = vector.shape_cast %547 : vector<256xf32> to vector<1x1x256xf32>
    tpu.vector_store %arg6[%c1_387, %c2_388, %c0_389], %550 {strides = array<i32>} : memref<2x8x256xf32, #tpu.memory_space<vmem>>, vector<1x1x256xf32>,
    %c3_390 = arith.constant 3 : index
    %551 = memref.load %arg3[%c3_390] : memref<8xi32, #tpu.memory_space<smem>>
    %552 = arith.index_cast %551 : i32 to index
    %c0_391 = arith.constant 0 : index
    %c0_392 = arith.constant 0 : index
    %553 = vector.load %arg7[%552, %c0_391, %c0_392] : memref<4x2x256xf32, #tpu.memory_space<vmem>>, vector<1x2x256xf32>
    %554 = vector.shape_cast %553 : vector<1x2x256xf32> to vector<2x256xf32>
    %c3_393 = arith.constant 3 : index
    %555 = memref.load %arg2[%c3_393] : memref<8xf32, #tpu.memory_space<smem>>
    %556 = vector.extract_strided_slice %554 {offsets = [0, 0], sizes = [1, 256], strides = [1, 1]} : vector<2x256xf32> to vector<1x256xf32>
    %557 = vector.shape_cast %556 : vector<1x256xf32> to vector<256xf32>
    %558 = vector.broadcast %555 : f32 to vector<256xf32>
    %559 = arith.mulf %558, %557 : vector<256xf32>
    %c0_394 = arith.constant 0 : index
    %c3_395 = arith.constant 3 : index
    %c0_396 = arith.constant 0 : index
    %560 = vector.load %arg6[%c0_394, %c3_395, %c0_396] : memref<2x8x256xf32, #tpu.memory_space<vmem>>, vector<1x1x256xf32>
    %561 = vector.shape_cast %560 : vector<1x1x256xf32> to vector<256xf32>
    %562 = vector.shape_cast %559 : vector<256xf32> to vector<1x1x256xf32>
    tpu.vector_store %arg6[%c0_394, %c3_395, %c0_396], %562 {strides = array<i32>} : memref<2x8x256xf32, #tpu.memory_space<vmem>>, vector<1x1x256xf32>,
    %563 = vector.extract_strided_slice %554 {offsets = [1, 0], sizes = [1, 256], strides = [1, 1]} : vector<2x256xf32> to vector<1x256xf32>
    %564 = vector.shape_cast %563 : vector<1x256xf32> to vector<256xf32>
    %565 = vector.broadcast %555 : f32 to vector<256xf32>
    %566 = arith.mulf %565, %564 : vector<256xf32>
    %c1_397 = arith.constant 1 : index
    %c3_398 = arith.constant 3 : index
    %c0_399 = arith.constant 0 : index
    %567 = vector.load %arg6[%c1_397, %c3_398, %c0_399] : memref<2x8x256xf32, #tpu.memory_space<vmem>>, vector<1x1x256xf32>
    %568 = vector.shape_cast %567 : vector<1x1x256xf32> to vector<256xf32>
    %569 = vector.shape_cast %566 : vector<256xf32> to vector<1x1x256xf32>
    tpu.vector_store %arg6[%c1_397, %c3_398, %c0_399], %569 {strides = array<i32>} : memref<2x8x256xf32, #tpu.memory_space<vmem>>, vector<1x1x256xf32>,
    %c4_400 = arith.constant 4 : index
    %570 = memref.load %arg3[%c4_400] : memref<8xi32, #tpu.memory_space<smem>>
    %571 = arith.index_cast %570 : i32 to index
    %c0_401 = arith.constant 0 : index
    %c0_402 = arith.constant 0 : index
    %572 = vector.load %arg7[%571, %c0_401, %c0_402] : memref<4x2x256xf32, #tpu.memory_space<vmem>>, vector<1x2x256xf32>
    %573 = vector.shape_cast %572 : vector<1x2x256xf32> to vector<2x256xf32>
    %c4_403 = arith.constant 4 : index
    %574 = memref.load %arg2[%c4_403] : memref<8xf32, #tpu.memory_space<smem>>
    %575 = vector.extract_strided_slice %573 {offsets = [0, 0], sizes = [1, 256], strides = [1, 1]} : vector<2x256xf32> to vector<1x256xf32>
    %576 = vector.shape_cast %575 : vector<1x256xf32> to vector<256xf32>
    %577 = vector.broadcast %574 : f32 to vector<256xf32>
    %578 = arith.mulf %577, %576 : vector<256xf32>
    %c0_404 = arith.constant 0 : index
    %c4_405 = arith.constant 4 : index
    %c0_406 = arith.constant 0 : index
    %579 = vector.load %arg6[%c0_404, %c4_405, %c0_406] : memref<2x8x256xf32, #tpu.memory_space<vmem>>, vector<1x1x256xf32>
    %580 = vector.shape_cast %579 : vector<1x1x256xf32> to vector<256xf32>
    %581 = vector.shape_cast %578 : vector<256xf32> to vector<1x1x256xf32>
    tpu.vector_store %arg6[%c0_404, %c4_405, %c0_406], %581 {strides = array<i32>} : memref<2x8x256xf32, #tpu.memory_space<vmem>>, vector<1x1x256xf32>,
    %582 = vector.extract_strided_slice %573 {offsets = [1, 0], sizes = [1, 256], strides = [1, 1]} : vector<2x256xf32> to vector<1x256xf32>
    %583 = vector.shape_cast %582 : vector<1x256xf32> to vector<256xf32>
    %584 = vector.broadcast %574 : f32 to vector<256xf32>
    %585 = arith.mulf %584, %583 : vector<256xf32>
    %c1_407 = arith.constant 1 : index
    %c4_408 = arith.constant 4 : index
    %c0_409 = arith.constant 0 : index
    %586 = vector.load %arg6[%c1_407, %c4_408, %c0_409] : memref<2x8x256xf32, #tpu.memory_space<vmem>>, vector<1x1x256xf32>
    %587 = vector.shape_cast %586 : vector<1x1x256xf32> to vector<256xf32>
    %588 = vector.shape_cast %585 : vector<256xf32> to vector<1x1x256xf32>
    tpu.vector_store %arg6[%c1_407, %c4_408, %c0_409], %588 {strides = array<i32>} : memref<2x8x256xf32, #tpu.memory_space<vmem>>, vector<1x1x256xf32>,
    %c5_410 = arith.constant 5 : index
    %589 = memref.load %arg3[%c5_410] : memref<8xi32, #tpu.memory_space<smem>>
    %590 = arith.index_cast %589 : i32 to index
    %c0_411 = arith.constant 0 : index
    %c0_412 = arith.constant 0 : index
    %591 = vector.load %arg7[%590, %c0_411, %c0_412] : memref<4x2x256xf32, #tpu.memory_space<vmem>>, vector<1x2x256xf32>
    %592 = vector.shape_cast %591 : vector<1x2x256xf32> to vector<2x256xf32>
    %c5_413 = arith.constant 5 : index
    %593 = memref.load %arg2[%c5_413] : memref<8xf32, #tpu.memory_space<smem>>
    %594 = vector.extract_strided_slice %592 {offsets = [0, 0], sizes = [1, 256], strides = [1, 1]} : vector<2x256xf32> to vector<1x256xf32>
    %595 = vector.shape_cast %594 : vector<1x256xf32> to vector<256xf32>
    %596 = vector.broadcast %593 : f32 to vector<256xf32>
    %597 = arith.mulf %596, %595 : vector<256xf32>
    %c0_414 = arith.constant 0 : index
    %c5_415 = arith.constant 5 : index
    %c0_416 = arith.constant 0 : index
    %598 = vector.load %arg6[%c0_414, %c5_415, %c0_416] : memref<2x8x256xf32, #tpu.memory_space<vmem>>, vector<1x1x256xf32>
    %599 = vector.shape_cast %598 : vector<1x1x256xf32> to vector<256xf32>
    %600 = vector.shape_cast %597 : vector<256xf32> to vector<1x1x256xf32>
    tpu.vector_store %arg6[%c0_414, %c5_415, %c0_416], %600 {strides = array<i32>} : memref<2x8x256xf32, #tpu.memory_space<vmem>>, vector<1x1x256xf32>,
    %601 = vector.extract_strided_slice %592 {offsets = [1, 0], sizes = [1, 256], strides = [1, 1]} : vector<2x256xf32> to vector<1x256xf32>
    %602 = vector.shape_cast %601 : vector<1x256xf32> to vector<256xf32>
    %603 = vector.broadcast %593 : f32 to vector<256xf32>
    %604 = arith.mulf %603, %602 : vector<256xf32>
    %c1_417 = arith.constant 1 : index
    %c5_418 = arith.constant 5 : index
    %c0_419 = arith.constant 0 : index
    %605 = vector.load %arg6[%c1_417, %c5_418, %c0_419] : memref<2x8x256xf32, #tpu.memory_space<vmem>>, vector<1x1x256xf32>
    %606 = vector.shape_cast %605 : vector<1x1x256xf32> to vector<256xf32>
    %607 = vector.shape_cast %604 : vector<256xf32> to vector<1x1x256xf32>
    tpu.vector_store %arg6[%c1_417, %c5_418, %c0_419], %607 {strides = array<i32>} : memref<2x8x256xf32, #tpu.memory_space<vmem>>, vector<1x1x256xf32>,
    %c6_420 = arith.constant 6 : index
    %608 = memref.load %arg3[%c6_420] : memref<8xi32, #tpu.memory_space<smem>>
    %609 = arith.index_cast %608 : i32 to index
    %c0_421 = arith.constant 0 : index
    %c0_422 = arith.constant 0 : index
    %610 = vector.load %arg7[%609, %c0_421, %c0_422] : memref<4x2x256xf32, #tpu.memory_space<vmem>>, vector<1x2x256xf32>
    %611 = vector.shape_cast %610 : vector<1x2x256xf32> to vector<2x256xf32>
    %c6_423 = arith.constant 6 : index
    %612 = memref.load %arg2[%c6_423] : memref<8xf32, #tpu.memory_space<smem>>
    %613 = vector.extract_strided_slice %611 {offsets = [0, 0], sizes = [1, 256], strides = [1, 1]} : vector<2x256xf32> to vector<1x256xf32>
    %614 = vector.shape_cast %613 : vector<1x256xf32> to vector<256xf32>
    %615 = vector.broadcast %612 : f32 to vector<256xf32>
    %616 = arith.mulf %615, %614 : vector<256xf32>
    %c0_424 = arith.constant 0 : index
    %c6_425 = arith.constant 6 : index
    %c0_426 = arith.constant 0 : index
    %617 = vector.load %arg6[%c0_424, %c6_425, %c0_426] : memref<2x8x256xf32, #tpu.memory_space<vmem>>, vector<1x1x256xf32>
    %618 = vector.shape_cast %617 : vector<1x1x256xf32> to vector<256xf32>
    %619 = vector.shape_cast %616 : vector<256xf32> to vector<1x1x256xf32>
    tpu.vector_store %arg6[%c0_424, %c6_425, %c0_426], %619 {strides = array<i32>} : memref<2x8x256xf32, #tpu.memory_space<vmem>>, vector<1x1x256xf32>,
    %620 = vector.extract_strided_slice %611 {offsets = [1, 0], sizes = [1, 256], strides = [1, 1]} : vector<2x256xf32> to vector<1x256xf32>
    %621 = vector.shape_cast %620 : vector<1x256xf32> to vector<256xf32>
    %622 = vector.broadcast %612 : f32 to vector<256xf32>
    %623 = arith.mulf %622, %621 : vector<256xf32>
    %c1_427 = arith.constant 1 : index
    %c6_428 = arith.constant 6 : index
    %c0_429 = arith.constant 0 : index
    %624 = vector.load %arg6[%c1_427, %c6_428, %c0_429] : memref<2x8x256xf32, #tpu.memory_space<vmem>>, vector<1x1x256xf32>
    %625 = vector.shape_cast %624 : vector<1x1x256xf32> to vector<256xf32>
    %626 = vector.shape_cast %623 : vector<256xf32> to vector<1x1x256xf32>
    tpu.vector_store %arg6[%c1_427, %c6_428, %c0_429], %626 {strides = array<i32>} : memref<2x8x256xf32, #tpu.memory_space<vmem>>, vector<1x1x256xf32>,
    %c7_430 = arith.constant 7 : index
    %627 = memref.load %arg3[%c7_430] : memref<8xi32, #tpu.memory_space<smem>>
    %628 = arith.index_cast %627 : i32 to index
    %c0_431 = arith.constant 0 : index
    %c0_432 = arith.constant 0 : index
    %629 = vector.load %arg7[%628, %c0_431, %c0_432] : memref<4x2x256xf32, #tpu.memory_space<vmem>>, vector<1x2x256xf32>
    %630 = vector.shape_cast %629 : vector<1x2x256xf32> to vector<2x256xf32>
    %c7_433 = arith.constant 7 : index
    %631 = memref.load %arg2[%c7_433] : memref<8xf32, #tpu.memory_space<smem>>
    %632 = vector.extract_strided_slice %630 {offsets = [0, 0], sizes = [1, 256], strides = [1, 1]} : vector<2x256xf32> to vector<1x256xf32>
    %633 = vector.shape_cast %632 : vector<1x256xf32> to vector<256xf32>
    %634 = vector.broadcast %631 : f32 to vector<256xf32>
    %635 = arith.mulf %634, %633 : vector<256xf32>
    %c0_434 = arith.constant 0 : index
    %c7_435 = arith.constant 7 : index
    %c0_436 = arith.constant 0 : index
    %636 = vector.load %arg6[%c0_434, %c7_435, %c0_436] : memref<2x8x256xf32, #tpu.memory_space<vmem>>, vector<1x1x256xf32>
    %637 = vector.shape_cast %636 : vector<1x1x256xf32> to vector<256xf32>
    %638 = vector.shape_cast %635 : vector<256xf32> to vector<1x1x256xf32>
    tpu.vector_store %arg6[%c0_434, %c7_435, %c0_436], %638 {strides = array<i32>} : memref<2x8x256xf32, #tpu.memory_space<vmem>>, vector<1x1x256xf32>,
    %639 = vector.extract_strided_slice %630 {offsets = [1, 0], sizes = [1, 256], strides = [1, 1]} : vector<2x256xf32> to vector<1x256xf32>
    %640 = vector.shape_cast %639 : vector<1x256xf32> to vector<256xf32>
    %641 = vector.broadcast %631 : f32 to vector<256xf32>
    %642 = arith.mulf %641, %640 : vector<256xf32>
    %c1_437 = arith.constant 1 : index
    %c7_438 = arith.constant 7 : index
    %c0_439 = arith.constant 0 : index
    %643 = vector.load %arg6[%c1_437, %c7_438, %c0_439] : memref<2x8x256xf32, #tpu.memory_space<vmem>>, vector<1x1x256xf32>
    %644 = vector.shape_cast %643 : vector<1x1x256xf32> to vector<256xf32>
    %645 = vector.shape_cast %642 : vector<256xf32> to vector<1x1x256xf32>
    tpu.vector_store %arg6[%c1_437, %c7_438, %c0_439], %645 {strides = array<i32>} : memref<2x8x256xf32, #tpu.memory_space<vmem>>, vector<1x1x256xf32>,
    return
  }
  func.func @transform_0(%arg0: i32) -> (i32, i32, i32, i32) {
    %c0_i32 = arith.constant 0 : i32
    %c0_i32_0 = arith.constant 0 : i32
    %c0_i32_1 = arith.constant 0 : i32
    %c0_i32_2 = arith.constant 0 : i32
    %c0_i32_3 = arith.constant 0 : i32
    return %c0_i32, %c0_i32_0, %c0_i32_1, %c0_i32_2 : i32, i32, i32, i32
  }
  func.func @transform_1(%arg0: i32) -> i32 {
    %c0_i32 = arith.constant 0 : i32
    %c0_i32_0 = arith.constant 0 : i32
    return %c0_i32 : i32
  }
  func.func @transform_2(%arg0: i32) -> i32 {
    %c0_i32 = arith.constant 0 : i32
    %c0_i32_0 = arith.constant 0 : i32
    return %c0_i32 : i32
  }
  func.func @transform_3(%arg0: i32) -> (i32, i32) {
    %c0_i32 = arith.constant 0 : i32
    %c0_i32_0 = arith.constant 0 : i32
    %c0_i32_1 = arith.constant 0 : i32
    return %c0_i32, %c0_i32_0 : i32, i32
  }
  func.func @transform_4(%arg0: i32) -> (i32, i32, i32) {
    %c0_i32 = arith.constant 0 : i32
    %c0_i32_0 = arith.constant 0 : i32
    %c0_i32_1 = arith.constant 0 : i32
    %c0_i32_2 = arith.constant 0 : i32
    return %c0_i32, %c0_i32_0, %c0_i32_1 : i32, i32, i32
  }
  func.func @transform_5(%arg0: i32) -> (i32, i32, i32) {
    %c0_i32 = arith.constant 0 : i32
    %c0_i32_0 = arith.constant 0 : i32
    %c0_i32_1 = arith.constant 0 : i32
    %c0_i32_2 = arith.constant 0 : i32
    return %c0_i32, %c0_i32_0, %c0_i32_1 : i32, i32, i32
  }
}

</mosaic_0001>

<llo_original>
// kernel: lego_cnn_forward.1
$region0: #{lego_cnn_forward.1}
  #allocation0 [shape = 'u32[]', space=smem, size = 0x4, offset = 0x4, fixed_abs, tag = 'smem constant byte address 0x4 - core index']
  #allocation1 [shape = 'u32[72,128]{1,0:T(1,128)}', space=vmem, size = 0x9000, scoped, tag = 'internal scratch']
  #allocation2 [shape = 'f32[4,2,256]{2,1,0:T(2,128)}', space=vmem, size = 0x2000, scoped, tag = 'scratch operand']
  %s0 = inlined_call_operand.vmem [shape: f32[9,4,4,1], index: 0, kind: input, shape index: {}]
  %s1 = inlined_call_operand.vmem [shape: f32[8], index: 1, kind: input, shape index: {}]
  %s2 = inlined_call_operand.vmem [shape: s32[8], index: 2, kind: input, shape index: {}]
  %s3 = inlined_call_operand.vmem [shape: f32[9,256], index: 3, kind: input, shape index: {}]
  %s4 = inlined_call_operand.vmem [shape: f32[2,4,256], index: 4, kind: input, shape index: {}]
  %s5 = inlined_call_operand.vmem [shape: f32[2,8,256], index: 5, kind: output, shape index: {}]
  %s6 = sld [smem:[#allocation0]]
  $region38: #{lego_cnn_forward.1} parent=0
    _
  %s8 = ssub.s32 1, %s6
  %s9 = scalar_select 0, %s8, %s6
  $region1: #{lego_cnn_forward.1} parent=0
    #allocation3 [shape = 'u8[512]{0}', space=smem, size = 0x200, scoped, tag = 'input window, operand 1, single buffered']
    #allocation4 [shape = 's32[1]{0}', space=sflag, size = 0x4, scoped, tag = 'scoped memory for lego_cnn_forward.1']
    #allocation5 [shape = 'u8[512]{0}', space=smem, size = 0x200, scoped, tag = 'input window, operand 2, single buffered']
    #allocation6 [shape = 's32[1]{0}', space=sflag, size = 0x4, scoped, tag = 'scoped memory for lego_cnn_forward.1']
    %10 = vsyncpa [#allocation4], 0
    %11 = vsyncpa [#allocation6], 0
    // Predicated region
    $region2: #{lego_cnn_forward.1} parent=1 // pred_check
      _
    $region3: #{lego_cnn_forward.1} parent=1 // pred_check_branch
      %13 = sbr.rel (0) target = $region5
    $region4: #{lego_cnn_forward.1} parent=1 // pred_region
      _
    $region5: #{lego_cnn_forward.1} parent=1 // pred_fallthru
      _
    // Predicated region
    $region6: #{lego_cnn_forward.1} parent=1 // pred_check
      _
    $region7: #{lego_cnn_forward.1} parent=1 // pred_check_branch
      %15 = sbr.rel (0) target = $region9
    $region8: #{lego_cnn_forward.1} parent=1 // pred_region
      %17 = vsyncadd [#allocation4], 0
      %s19 = sshll.u32 %s1, 4
      %s20 = int_to_ptr.vmem [resolvable:$true] %s19
      %22 = dma.vmem_to_smem %s20, 16, [#allocation3], [#allocation4]
    $region9: #{lego_cnn_forward.1} parent=1 // pred_fallthru
      _
    // Predicated region
    $region10: #{lego_cnn_forward.1} parent=1 // pred_check
      _
    $region11: #{lego_cnn_forward.1} parent=1 // pred_check_branch
      %24 = sbr.rel (0) target = $region13
    $region12: #{lego_cnn_forward.1} parent=1 // pred_region
      %26 = vsyncadd [#allocation6], 0
      %s28 = sshll.u32 %s2, 4
      %s29 = int_to_ptr.vmem [resolvable:$true] %s28
      %31 = dma.vmem_to_smem %s29, 16, [#allocation5], [#allocation6]
    $region13: #{lego_cnn_forward.1} parent=1 // pred_fallthru
      _
    // Predicated region
    $region14: #{lego_cnn_forward.1} parent=1 // pred_check
      _
    $region15: #{lego_cnn_forward.1} parent=1 // pred_check_branch
      %33 = sbr.rel (0) target = $region17
    $region16: #{lego_cnn_forward.1} parent=1 // pred_region
      _
    $region17: #{lego_cnn_forward.1} parent=1 // pred_fallthru
      _
    // Predicated region
    $region18: #{lego_cnn_forward.1} parent=1 // pred_check
      _
    $region19: #{lego_cnn_forward.1} parent=1 // pred_check_branch
      %35 = sbr.rel (0) target = $region21
    $region20: #{lego_cnn_forward.1} parent=1 // pred_region
      _
    $region21: #{lego_cnn_forward.1} parent=1 // pred_fallthru
      _
    // Predicated region
    $region22: #{lego_cnn_forward.1} parent=1 // pred_check
      _
    $region23: #{lego_cnn_forward.1} parent=1 // pred_check_branch
      %37 = sbr.rel (0) target = $region25
    $region24: #{lego_cnn_forward.1} parent=1 // pred_region
      %39 = dma.done [#allocation4], 16
    $region25: #{lego_cnn_forward.1} parent=1 // pred_fallthru
      _
    // Predicated region
    $region26: #{lego_cnn_forward.1} parent=1 // pred_check
      _
    $region27: #{lego_cnn_forward.1} parent=1 // pred_check_branch
      %41 = sbr.rel (0) target = $region29
    $region28: #{lego_cnn_forward.1} parent=1 // pred_region
      %43 = dma.done [#allocation6], 16
    $region29: #{lego_cnn_forward.1} parent=1 // pred_fallthru
      _
    %44 = sfence
    %v45 = vld [vmem:[%s4] sm:$0xff]
    %47 = vst [vmem:[#allocation1] ss:$2 sm:$0xff] %v45
    %v48 = vld.sshfl [vmem:[#allocation1] sm:$0xff pattern:$0x75316420]
    %v49 = vld.sshfl [vmem:[#allocation1 + $0x8] sm:$0xff pattern:$0x75316420]
    %52 = vrot.lane.b32.xlu0 %v48, 17
    %v53 = vpop.permute.xlu0 %52
    %54 = vrot.lane.b32.xlu0 %v49, 17
    %v55 = vpop.permute.xlu0 %54
    %v56 = vlaneseq
    %v57 = vand.u32 %v56, 127
    %vm58 = vcmp.lt.s32.totalorder %v57, 17
    %v59 = vsel %vm58, %v53, %v55
    %v60 = vsel %vm58, %v55, %v53
    %v61 = vld [vmem:[%s3] ss:$8 sm:$0x3]
    %v63 = vperm.slane %v61, 0
    %v64 = vperm.slane %v61, 1
    %v67 = vmul.f32 %v63, %v60
    %v68 = vmul.f32 %v64, %v59
    %69 = vst [vmem:[#allocation1] ss:$2 sm:$0xff] %v45
    %v70 = vld.sshfl [vmem:[#allocation1] sm:$0xff pattern:$0x75316420]
    %v71 = vld.sshfl [vmem:[#allocation1 + $0x8] sm:$0xff pattern:$0x75316420]
    %74 = vrot.lane.b32.xlu0 %v70, 16
    %v75 = vpop.permute.xlu0 %74
    %76 = vrot.lane.b32.xlu0 %v71, 16
    %v77 = vpop.permute.xlu0 %76
    %vm78 = vcmp.lt.s32.totalorder %v57, 16
    %v79 = vsel %vm78, %v75, %v77
    %v80 = vsel %vm78, %v77, %v75
    %s81 = scalar_lea.vmem %s3, 1
    %v82 = vld [vmem:[%s81] ss:$8 sm:$0x3]
    %v84 = vperm.slane %v82, 0
    %v85 = vperm.slane %v82, 1
    %v88 = vmul.f32 %v84, %v80
    %v89 = vmul.f32 %v85, %v79
    %90 = vst [vmem:[#allocation1] ss:$2 sm:$0xff] %v45
    %v91 = vld.sshfl [vmem:[#allocation1] sm:$0xff pattern:$0x75316420]
    %v92 = vld.sshfl [vmem:[#allocation1 + $0x8] sm:$0xff pattern:$0x75316420]
    %95 = vrot.lane.b32.xlu0 %v91, 15
    %v96 = vpop.permute.xlu0 %95
    %97 = vrot.lane.b32.xlu0 %v92, 15
    %v98 = vpop.permute.xlu0 %97
    %vm99 = vcmp.lt.s32.totalorder %v57, 15
    %v100 = vsel %vm99, %v96, %v98
    %v101 = vsel %vm99, %v98, %v96
    %s102 = scalar_lea.vmem %s3, 2
    %v103 = vld [vmem:[%s102] ss:$8 sm:$0x3]
    %v105 = vperm.slane %v103, 0
    %v106 = vperm.slane %v103, 1
    %v109 = vmul.f32 %v105, %v101
    %v110 = vmul.f32 %v106, %v100
    %111 = vst [vmem:[#allocation1] ss:$2 sm:$0xff] %v45
    %v112 = vld.sshfl [vmem:[#allocation1] sm:$0xff pattern:$0x75316420]
    %v113 = vld.sshfl [vmem:[#allocation1 + $0x8] sm:$0xff pattern:$0x75316420]
    %116 = vrot.lane.b32.xlu0 %v112, 1
    %v117 = vpop.permute.xlu0 %116
    %118 = vrot.lane.b32.xlu0 %v113, 1
    %v119 = vpop.permute.xlu0 %118
    %vm120 = vcmp.lt.s32.totalorder %v57, 1
    %v121 = vsel %vm120, %v117, %v119
    %v122 = vsel %vm120, %v119, %v117
    %s123 = scalar_lea.vmem %s3, 3
    %v124 = vld [vmem:[%s123] ss:$8 sm:$0x3]
    %v126 = vperm.slane %v124, 0
    %v127 = vperm.slane %v124, 1
    %v130 = vmul.f32 %v126, %v122
    %v131 = vmul.f32 %v127, %v121
    %s132 = scalar_lea.vmem %s3, 4
    %v133 = vld [vmem:[%s132] ss:$8 sm:$0x3]
    %v135 = vperm.slane %v133, 0
    %v136 = vperm.slane %v133, 1
    %139 = vst [vmem:[#allocation1] ss:$2 sm:$0xff] %v45
    %v140 = vld.sshfl [vmem:[#allocation1] sm:$0xff pattern:$0x75316420]
    %v141 = vld.sshfl [vmem:[#allocation1 + $0x8] sm:$0xff pattern:$0x75316420]
    %v144 = vmul.f32 %v135, %v140
    %v145 = vmul.f32 %v136, %v141
    %146 = vst [vmem:[#allocation1] ss:$2 sm:$0xff] %v45
    %v147 = vld.sshfl [vmem:[#allocation1] sm:$0xff pattern:$0x75316420]
    %v148 = vld.sshfl [vmem:[#allocation1 + $0x8] sm:$0xff pattern:$0x75316420]
    %151 = vrot.lane.b32.xlu0 %v147, 127
    %v152 = vpop.permute.xlu0 %151
    %153 = vrot.lane.b32.xlu0 %v148, 127
    %v154 = vpop.permute.xlu0 %153
    %vm155 = vcmp.lt.s32.totalorder %v57, 127
    %v156 = vsel %vm155, %v152, %v154
    %v157 = vsel %vm155, %v154, %v152
    %s158 = scalar_lea.vmem %s3, 5
    %v159 = vld [vmem:[%s158] ss:$8 sm:$0x3]
    %v161 = vperm.slane %v159, 0
    %v162 = vperm.slane %v159, 1
    %v165 = vmul.f32 %v161, %v156
    %v166 = vmul.f32 %v162, %v157
    %167 = vst [vmem:[#allocation1] ss:$2 sm:$0xff] %v45
    %v168 = vld.sshfl [vmem:[#allocation1] sm:$0xff pattern:$0x75316420]
    %v169 = vld.sshfl [vmem:[#allocation1 + $0x8] sm:$0xff pattern:$0x75316420]
    %172 = vrot.lane.b32.xlu0 %v168, 113
    %v173 = vpop.permute.xlu0 %172
    %174 = vrot.lane.b32.xlu0 %v169, 113
    %v175 = vpop.permute.xlu0 %174
    %vm176 = vcmp.lt.s32.totalorder %v57, 113
    %v177 = vsel %vm176, %v173, %v175
    %v178 = vsel %vm176, %v175, %v173
    %s179 = scalar_lea.vmem %s3, 6
    %v180 = vld [vmem:[%s179] ss:$8 sm:$0x3]
    %v182 = vperm.slane %v180, 0
    %v183 = vperm.slane %v180, 1
    %v186 = vmul.f32 %v182, %v177
    %v187 = vmul.f32 %v183, %v178
    %188 = vst [vmem:[#allocation1] ss:$2 sm:$0xff] %v45
    %v189 = vld.sshfl [vmem:[#allocation1] sm:$0xff pattern:$0x75316420]
    %v190 = vld.sshfl [vmem:[#allocation1 + $0x8] sm:$0xff pattern:$0x75316420]
    %193 = vrot.lane.b32.xlu0 %v189, 112
    %v194 = vpop.permute.xlu0 %193
    %195 = vrot.lane.b32.xlu0 %v190, 112
    %v196 = vpop.permute.xlu0 %195
    %vm197 = vcmp.lt.s32.totalorder %v57, 112
    %v198 = vsel %vm197, %v194, %v196
    %v199 = vsel %vm197, %v196, %v194
    %s200 = scalar_lea.vmem %s3, 7
    %v201 = vld [vmem:[%s200] ss:$8 sm:$0x3]
    %v203 = vperm.slane %v201, 0
    %v204 = vperm.slane %v201, 1
    %v207 = vmul.f32 %v203, %v198
    %v208 = vmul.f32 %v204, %v199
    %209 = vst [vmem:[#allocation1] ss:$2 sm:$0xff] %v45
    %v210 = vld.sshfl [vmem:[#allocation1] sm:$0xff pattern:$0x75316420]
    %v211 = vld.sshfl [vmem:[#allocation1 + $0x8] sm:$0xff pattern:$0x75316420]
    %214 = vrot.lane.b32.xlu0 %v210, 111
    %v215 = vpop.permute.xlu0 %214
    %216 = vrot.lane.b32.xlu0 %v211, 111
    %v217 = vpop.permute.xlu0 %216
    %vm218 = vcmp.lt.s32.totalorder %v57, 111
    %v219 = vsel %vm218, %v215, %v217
    %v220 = vsel %vm218, %v217, %v215
    %s221 = scalar_lea.vmem %s3, 16
    %v222 = vld [vmem:[%s221] ss:$8 sm:$0x3]
    %v224 = vperm.slane %v222, 0
    %v225 = vperm.slane %v222, 1
    %v228 = vmul.f32 %v224, %v219
    %v229 = vmul.f32 %v225, %v220
    %v230 = vld [vmem:[%s0] sm:$0xf]
    %232 = vset.pattern.permute.xlu0 0
    %233 = vperm.xlu0 %232, %v230
    %v234 = vpop.permute.xlu0 %233
    %v236 = vmul.f32 %v67, %v234
    %v237 = vmul.f32 %v68, %v234
    %s238 = scalar_lea.vmem %s0, 16
    %v239 = vld [vmem:[%s238] sm:$0xf]
    %241 = vset.pattern.permute.xlu0 0
    %242 = vperm.xlu0 %241, %v239
    %v243 = vpop.permute.xlu0 %242
    %v245 = vmul.f32 %v88, %v243
    %v246 = vmul.f32 %v89, %v243
    %v247 = vadd.f32 %v236, %v245
    %v248 = vadd.f32 %v237, %v246
    %s249 = scalar_lea.vmem %s0, 32
    %v250 = vld [vmem:[%s249] sm:$0xf]
    %252 = vset.pattern.permute.xlu0 0
    %253 = vperm.xlu0 %252, %v250
    %v254 = vpop.permute.xlu0 %253
    %v256 = vmul.f32 %v109, %v254
    %v257 = vmul.f32 %v110, %v254
    %v258 = vadd.f32 %v247, %v256
    %v259 = vadd.f32 %v248, %v257
    %s260 = scalar_lea.vmem %s0, 48
    %v261 = vld [vmem:[%s260] sm:$0xf]
    %263 = vset.pattern.permute.xlu0 0
    %264 = vperm.xlu0 %263, %v261
    %v265 = vpop.permute.xlu0 %264
    %v267 = vmul.f32 %v130, %v265
    %v268 = vmul.f32 %v131, %v265
    %v269 = vadd.f32 %v258, %v267
    %v270 = vadd.f32 %v259, %v268
    %s271 = scalar_lea.vmem %s0, 64
    %v272 = vld [vmem:[%s271] sm:$0xf]
    %274 = vset.pattern.permute.xlu0 0
    %275 = vperm.xlu0 %274, %v272
    %v276 = vpop.permute.xlu0 %275
    %v278 = vmul.f32 %v144, %v276
    %v279 = vmul.f32 %v145, %v276
    %v280 = vadd.f32 %v269, %v278
    %v281 = vadd.f32 %v270, %v279
    %s282 = scalar_lea.vmem %s0, 80
    %v283 = vld [vmem:[%s282] sm:$0xf]
    %285 = vset.pattern.permute.xlu0 0
    %286 = vperm.xlu0 %285, %v283
    %v287 = vpop.permute.xlu0 %286
    %v289 = vmul.f32 %v165, %v287
    %v290 = vmul.f32 %v166, %v287
    %v291 = vadd.f32 %v280, %v289
    %v292 = vadd.f32 %v281, %v290
    %s293 = scalar_lea.vmem %s0, 96
    %v294 = vld [vmem:[%s293] sm:$0xf]
    %296 = vset.pattern.permute.xlu0 0
    %297 = vperm.xlu0 %296, %v294
    %v298 = vpop.permute.xlu0 %297
    %v300 = vmul.f32 %v186, %v298
    %v301 = vmul.f32 %v187, %v298
    %v302 = vadd.f32 %v291, %v300
    %v303 = vadd.f32 %v292, %v301
    %s304 = scalar_lea.vmem %s0, 112
    %v305 = vld [vmem:[%s304] sm:$0xf]
    %307 = vset.pattern.permute.xlu0 0
    %308 = vperm.xlu0 %307, %v305
    %v309 = vpop.permute.xlu0 %308
    %v311 = vmul.f32 %v207, %v309
    %v312 = vmul.f32 %v208, %v309
    %v313 = vadd.f32 %v302, %v311
    %v314 = vadd.f32 %v303, %v312
    %s315 = scalar_lea.vmem %s0, 128
    %v316 = vld [vmem:[%s315] sm:$0xf]
    %318 = vset.pattern.permute.xlu0 0
    %319 = vperm.xlu0 %318, %v316
    %v320 = vpop.permute.xlu0 %319
    %v322 = vmul.f32 %v228, %v320
    %v323 = vmul.f32 %v229, %v320
    %v324 = vadd.f32 %v313, %v322
    %v325 = vadd.f32 %v314, %v323
    %vm326 = vcmask 1043456
    %v327 = vsel %vm326, %v324, 0.0
    %v328 = vrot.slane %v327, 4
    %v329 = vadd.f32 %v327, %v328
    %v330 = vrot.slane %v329, 2
    %v331 = vadd.f32 %v329, %v330
    %v332 = vrot.slane %v331, 1
    %v333 = vadd.f32 %v331, %v332
    %v334 = vsel %vm326, %v325, 0.0
    %v335 = vrot.slane %v334, 4
    %v336 = vadd.f32 %v334, %v335
    %v337 = vrot.slane %v336, 2
    %v338 = vadd.f32 %v336, %v337
    %v339 = vrot.slane %v338, 1
    %v340 = vadd.f32 %v338, %v339
    %v343 = vrot.slane %v340, 7
    %vm344 = vcmask 1040384
    %v345 = vsel %vm344, %v333, %v343
    %v347 = vlaneseq
    %vm348 = vcmp.ge.s32.totalorder %v347, 0
    %vm349 = vcmp.lt.s32.totalorder %v347, 256
    %vm350 = vmand %vm348, %vm349
    %351 = vst.msk [vmem:[#allocation2] ss:$2 sm:$0x3] %vm350, %v345
    %s352 = scalar_lea.vmem %s0, 4
    %v353 = vld [vmem:[%s352] sm:$0xf]
    %355 = vset.pattern.permute.xlu0 0
    %356 = vperm.xlu0 %355, %v353
    %v357 = vpop.permute.xlu0 %356
    %v359 = vmul.f32 %v67, %v357
    %v360 = vmul.f32 %v68, %v357
    %s361 = scalar_lea.vmem %s0, 20
    %v362 = vld [vmem:[%s361] sm:$0xf]
    %364 = vset.pattern.permute.xlu0 0
    %365 = vperm.xlu0 %364, %v362
    %v366 = vpop.permute.xlu0 %365
    %v368 = vmul.f32 %v88, %v366
    %v369 = vmul.f32 %v89, %v366
    %v370 = vadd.f32 %v359, %v368
    %v371 = vadd.f32 %v360, %v369
    %s372 = scalar_lea.vmem %s0, 36
    %v373 = vld [vmem:[%s372] sm:$0xf]
    %375 = vset.pattern.permute.xlu0 0
    %376 = vperm.xlu0 %375, %v373
    %v377 = vpop.permute.xlu0 %376
    %v379 = vmul.f32 %v109, %v377
    %v380 = vmul.f32 %v110, %v377
    %v381 = vadd.f32 %v370, %v379
    %v382 = vadd.f32 %v371, %v380
    %s383 = scalar_lea.vmem %s0, 52
    %v384 = vld [vmem:[%s383] sm:$0xf]
    %386 = vset.pattern.permute.xlu0 0
    %387 = vperm.xlu0 %386, %v384
    %v388 = vpop.permute.xlu0 %387
    %v390 = vmul.f32 %v130, %v388
    %v391 = vmul.f32 %v131, %v388
    %v392 = vadd.f32 %v381, %v390
    %v393 = vadd.f32 %v382, %v391
    %s394 = scalar_lea.vmem %s0, 68
    %v395 = vld [vmem:[%s394] sm:$0xf]
    %397 = vset.pattern.permute.xlu0 0
    %398 = vperm.xlu0 %397, %v395
    %v399 = vpop.permute.xlu0 %398
    %v401 = vmul.f32 %v144, %v399
    %v402 = vmul.f32 %v145, %v399
    %v403 = vadd.f32 %v392, %v401
    %v404 = vadd.f32 %v393, %v402
    %s405 = scalar_lea.vmem %s0, 84
    %v406 = vld [vmem:[%s405] sm:$0xf]
    %408 = vset.pattern.permute.xlu0 0
    %409 = vperm.xlu0 %408, %v406
    %v410 = vpop.permute.xlu0 %409
    %v412 = vmul.f32 %v165, %v410
    %v413 = vmul.f32 %v166, %v410
    %v414 = vadd.f32 %v403, %v412
    %v415 = vadd.f32 %v404, %v413
    %s416 = scalar_lea.vmem %s0, 100
    %v417 = vld [vmem:[%s416] sm:$0xf]
    %419 = vset.pattern.permute.xlu0 0
    %420 = vperm.xlu0 %419, %v417
    %v421 = vpop.permute.xlu0 %420
    %v423 = vmul.f32 %v186, %v421
    %v424 = vmul.f32 %v187, %v421
    %v425 = vadd.f32 %v414, %v423
    %v426 = vadd.f32 %v415, %v424
    %s427 = scalar_lea.vmem %s0, 116
    %v428 = vld [vmem:[%s427] sm:$0xf]
    %430 = vset.pattern.permute.xlu0 0
    %431 = vperm.xlu0 %430, %v428
    %v432 = vpop.permute.xlu0 %431
    %v434 = vmul.f32 %v207, %v432
    %v435 = vmul.f32 %v208, %v432
    %v436 = vadd.f32 %v425, %v434
    %v437 = vadd.f32 %v426, %v435
    %s438 = scalar_lea.vmem %s0, 132
    %v439 = vld [vmem:[%s438] sm:$0xf]
    %441 = vset.pattern.permute.xlu0 0
    %442 = vperm.xlu0 %441, %v439
    %v443 = vpop.permute.xlu0 %442
    %v445 = vmul.f32 %v228, %v443
    %v446 = vmul.f32 %v229, %v443
    %v447 = vadd.f32 %v436, %v445
    %v448 = vadd.f32 %v437, %v446
    %v449 = vsel %vm326, %v447, 0.0
    %v450 = vrot.slane %v449, 4
    %v451 = vadd.f32 %v449, %v450
    %v452 = vrot.slane %v451, 2
    %v453 = vadd.f32 %v451, %v452
    %v454 = vrot.slane %v453, 1
    %v455 = vadd.f32 %v453, %v454
    %v456 = vsel %vm326, %v448, 0.0
    %v457 = vrot.slane %v456, 4
    %v458 = vadd.f32 %v456, %v457
    %v459 = vrot.slane %v458, 2
    %v460 = vadd.f32 %v458, %v459
    %v461 = vrot.slane %v460, 1
    %v462 = vadd.f32 %v460, %v461
    %v465 = vrot.slane %v462, 7
    %v466 = vsel %vm344, %v455, %v465
    %s468 = scalar_lea.vmem [#allocation2], 4
    %469 = vst.msk [vmem:[%s468] ss:$2 sm:$0x3] %vm350, %v466
    %s470 = scalar_lea.vmem %s0, 8
    %v471 = vld [vmem:[%s470] sm:$0xf]
    %473 = vset.pattern.permute.xlu0 0
    %474 = vperm.xlu0 %473, %v471
    %v475 = vpop.permute.xlu0 %474
    %v477 = vmul.f32 %v67, %v475
    %v478 = vmul.f32 %v68, %v475
    %s479 = scalar_lea.vmem %s0, 24
    %v480 = vld [vmem:[%s479] sm:$0xf]
    %482 = vset.pattern.permute.xlu0 0
    %483 = vperm.xlu0 %482, %v480
    %v484 = vpop.permute.xlu0 %483
    %v486 = vmul.f32 %v88, %v484
    %v487 = vmul.f32 %v89, %v484
    %v488 = vadd.f32 %v477, %v486
    %v489 = vadd.f32 %v478, %v487
    %s490 = scalar_lea.vmem %s0, 40
    %v491 = vld [vmem:[%s490] sm:$0xf]
    %493 = vset.pattern.permute.xlu0 0
    %494 = vperm.xlu0 %493, %v491
    %v495 = vpop.permute.xlu0 %494
    %v497 = vmul.f32 %v109, %v495
    %v498 = vmul.f32 %v110, %v495
    %v499 = vadd.f32 %v488, %v497
    %v500 = vadd.f32 %v489, %v498
    %s501 = scalar_lea.vmem %s0, 56
    %v502 = vld [vmem:[%s501] sm:$0xf]
    %504 = vset.pattern.permute.xlu0 0
    %505 = vperm.xlu0 %504, %v502
    %v506 = vpop.permute.xlu0 %505
    %v508 = vmul.f32 %v130, %v506
    %v509 = vmul.f32 %v131, %v506
    %v510 = vadd.f32 %v499, %v508
    %v511 = vadd.f32 %v500, %v509
    %s512 = scalar_lea.vmem %s0, 72
    %v513 = vld [vmem:[%s512] sm:$0xf]
    %515 = vset.pattern.permute.xlu0 0
    %516 = vperm.xlu0 %515, %v513
    %v517 = vpop.permute.xlu0 %516
    %v519 = vmul.f32 %v144, %v517
    %v520 = vmul.f32 %v145, %v517
    %v521 = vadd.f32 %v510, %v519
    %v522 = vadd.f32 %v511, %v520
    %s523 = scalar_lea.vmem %s0, 88
    %v524 = vld [vmem:[%s523] sm:$0xf]
    %526 = vset.pattern.permute.xlu0 0
    %527 = vperm.xlu0 %526, %v524
    %v528 = vpop.permute.xlu0 %527
    %v530 = vmul.f32 %v165, %v528
    %v531 = vmul.f32 %v166, %v528
    %v532 = vadd.f32 %v521, %v530
    %v533 = vadd.f32 %v522, %v531
    %s534 = scalar_lea.vmem %s0, 104
    %v535 = vld [vmem:[%s534] sm:$0xf]
    %537 = vset.pattern.permute.xlu0 0
    %538 = vperm.xlu0 %537, %v535
    %v539 = vpop.permute.xlu0 %538
    %v541 = vmul.f32 %v186, %v539
    %v542 = vmul.f32 %v187, %v539
    %v543 = vadd.f32 %v532, %v541
    %v544 = vadd.f32 %v533, %v542
    %s545 = scalar_lea.vmem %s0, 120
    %v546 = vld [vmem:[%s545] sm:$0xf]
    %548 = vset.pattern.permute.xlu0 0
    %549 = vperm.xlu0 %548, %v546
    %v550 = vpop.permute.xlu0 %549
    %v552 = vmul.f32 %v207, %v550
    %v553 = vmul.f32 %v208, %v550
    %v554 = vadd.f32 %v543, %v552
    %v555 = vadd.f32 %v544, %v553
    %s556 = scalar_lea.vmem %s0, 136
    %v557 = vld [vmem:[%s556] sm:$0xf]
    %559 = vset.pattern.permute.xlu0 0
    %560 = vperm.xlu0 %559, %v557
    %v561 = vpop.permute.xlu0 %560
    %v563 = vmul.f32 %v228, %v561
    %v564 = vmul.f32 %v229, %v561
    %v565 = vadd.f32 %v554, %v563
    %v566 = vadd.f32 %v555, %v564
    %v567 = vsel %vm326, %v565, 0.0
    %v568 = vrot.slane %v567, 4
    %v569 = vadd.f32 %v567, %v568
    %v570 = vrot.slane %v569, 2
    %v571 = vadd.f32 %v569, %v570
    %v572 = vrot.slane %v571, 1
    %v573 = vadd.f32 %v571, %v572
    %v574 = vsel %vm326, %v566, 0.0
    %v575 = vrot.slane %v574, 4
    %v576 = vadd.f32 %v574, %v575
    %v577 = vrot.slane %v576, 2
    %v578 = vadd.f32 %v576, %v577
    %v579 = vrot.slane %v578, 1
    %v580 = vadd.f32 %v578, %v579
    %v583 = vrot.slane %v580, 7
    %v584 = vsel %vm344, %v573, %v583
    %s586 = scalar_lea.vmem [#allocation2], 8
    %587 = vst.msk [vmem:[%s586] ss:$2 sm:$0x3] %vm350, %v584
    %s588 = scalar_lea.vmem %s0, 12
    %v589 = vld [vmem:[%s588] sm:$0xf]
    %591 = vset.pattern.permute.xlu0 0
    %592 = vperm.xlu0 %591, %v589
    %v593 = vpop.permute.xlu0 %592
    %v595 = vmul.f32 %v67, %v593
    %v596 = vmul.f32 %v68, %v593
    %s597 = scalar_lea.vmem %s0, 28
    %v598 = vld [vmem:[%s597] sm:$0xf]
    %600 = vset.pattern.permute.xlu0 0
    %601 = vperm.xlu0 %600, %v598
    %v602 = vpop.permute.xlu0 %601
    %v604 = vmul.f32 %v88, %v602
    %v605 = vmul.f32 %v89, %v602
    %v606 = vadd.f32 %v595, %v604
    %v607 = vadd.f32 %v596, %v605
    %s608 = scalar_lea.vmem %s0, 44
    %v609 = vld [vmem:[%s608] sm:$0xf]
    %611 = vset.pattern.permute.xlu0 0
    %612 = vperm.xlu0 %611, %v609
    %v613 = vpop.permute.xlu0 %612
    %v615 = vmul.f32 %v109, %v613
    %v616 = vmul.f32 %v110, %v613
    %v617 = vadd.f32 %v606, %v615
    %v618 = vadd.f32 %v607, %v616
    %s619 = scalar_lea.vmem %s0, 60
    %v620 = vld [vmem:[%s619] sm:$0xf]
    %622 = vset.pattern.permute.xlu0 0
    %623 = vperm.xlu0 %622, %v620
    %v624 = vpop.permute.xlu0 %623
    %v626 = vmul.f32 %v130, %v624
    %v627 = vmul.f32 %v131, %v624
    %v628 = vadd.f32 %v617, %v626
    %v629 = vadd.f32 %v618, %v627
    %s630 = scalar_lea.vmem %s0, 76
    %v631 = vld [vmem:[%s630] sm:$0xf]
    %633 = vset.pattern.permute.xlu0 0
    %634 = vperm.xlu0 %633, %v631
    %v635 = vpop.permute.xlu0 %634
    %v637 = vmul.f32 %v144, %v635
    %v638 = vmul.f32 %v145, %v635
    %v639 = vadd.f32 %v628, %v637
    %v640 = vadd.f32 %v629, %v638
    %s641 = scalar_lea.vmem %s0, 92
    %v642 = vld [vmem:[%s641] sm:$0xf]
    %644 = vset.pattern.permute.xlu0 0
    %645 = vperm.xlu0 %644, %v642
    %v646 = vpop.permute.xlu0 %645
    %v648 = vmul.f32 %v165, %v646
    %v649 = vmul.f32 %v166, %v646
    %v650 = vadd.f32 %v639, %v648
    %v651 = vadd.f32 %v640, %v649
    %s652 = scalar_lea.vmem %s0, 108
    %v653 = vld [vmem:[%s652] sm:$0xf]
    %655 = vset.pattern.permute.xlu0 0
    %656 = vperm.xlu0 %655, %v653
    %v657 = vpop.permute.xlu0 %656
    %v659 = vmul.f32 %v186, %v657
    %v660 = vmul.f32 %v187, %v657
    %v661 = vadd.f32 %v650, %v659
    %v662 = vadd.f32 %v651, %v660
    %s663 = scalar_lea.vmem %s0, 124
    %v664 = vld [vmem:[%s663] sm:$0xf]
    %666 = vset.pattern.permute.xlu0 0
    %667 = vperm.xlu0 %666, %v664
    %v668 = vpop.permute.xlu0 %667
    %v670 = vmul.f32 %v207, %v668
    %v671 = vmul.f32 %v208, %v668
    %v672 = vadd.f32 %v661, %v670
    %v673 = vadd.f32 %v662, %v671
    %s674 = scalar_lea.vmem %s0, 140
    %v675 = vld [vmem:[%s674] sm:$0xf]
    %677 = vset.pattern.permute.xlu0 0
    %678 = vperm.xlu0 %677, %v675
    %v679 = vpop.permute.xlu0 %678
    %v681 = vmul.f32 %v228, %v679
    %v682 = vmul.f32 %v229, %v679
    %v683 = vadd.f32 %v672, %v681
    %v684 = vadd.f32 %v673, %v682
    %v685 = vsel %vm326, %v683, 0.0
    %v686 = vrot.slane %v685, 4
    %v687 = vadd.f32 %v685, %v686
    %v688 = vrot.slane %v687, 2
    %v689 = vadd.f32 %v687, %v688
    %v690 = vrot.slane %v689, 1
    %v691 = vadd.f32 %v689, %v690
    %v692 = vsel %vm326, %v684, 0.0
    %v693 = vrot.slane %v692, 4
    %v694 = vadd.f32 %v692, %v693
    %v695 = vrot.slane %v694, 2
    %v696 = vadd.f32 %v694, %v695
    %v697 = vrot.slane %v696, 1
    %v698 = vadd.f32 %v696, %v697
    %v701 = vrot.slane %v698, 7
    %v702 = vsel %vm344, %v691, %v701
    %s704 = scalar_lea.vmem [#allocation2], 12
    %705 = vst.msk [vmem:[%s704] ss:$2 sm:$0x3] %vm350, %v702
    %s706 = scalar_lea.vmem %s4, 8
    %v707 = vld [vmem:[%s706] sm:$0xff]
    %709 = vst [vmem:[#allocation1] ss:$2 sm:$0xff] %v707
    %v710 = vld.sshfl [vmem:[#allocation1] sm:$0xff pattern:$0x75316420]
    %v711 = vld.sshfl [vmem:[#allocation1 + $0x8] sm:$0xff pattern:$0x75316420]
    %714 = vrot.lane.b32.xlu0 %v710, 17
    %v715 = vpop.permute.xlu0 %714
    %716 = vrot.lane.b32.xlu0 %v711, 17
    %v717 = vpop.permute.xlu0 %716
    %v718 = vsel %vm58, %v715, %v717
    %v719 = vsel %vm58, %v717, %v715
    %v720 = vld [vmem:[%s3] ss:$8 sm:$0x3]
    %v722 = vperm.slane %v720, 0
    %v723 = vperm.slane %v720, 1
    %v726 = vmul.f32 %v722, %v719
    %v727 = vmul.f32 %v723, %v718
    %728 = vst [vmem:[#allocation1] ss:$2 sm:$0xff] %v707
    %v729 = vld.sshfl [vmem:[#allocation1] sm:$0xff pattern:$0x75316420]
    %v730 = vld.sshfl [vmem:[#allocation1 + $0x8] sm:$0xff pattern:$0x75316420]
    %733 = vrot.lane.b32.xlu0 %v729, 16
    %v734 = vpop.permute.xlu0 %733
    %735 = vrot.lane.b32.xlu0 %v730, 16
    %v736 = vpop.permute.xlu0 %735
    %v737 = vsel %vm78, %v734, %v736
    %v738 = vsel %vm78, %v736, %v734
    %v739 = vld [vmem:[%s81] ss:$8 sm:$0x3]
    %v741 = vperm.slane %v739, 0
    %v742 = vperm.slane %v739, 1
    %v745 = vmul.f32 %v741, %v738
    %v746 = vmul.f32 %v742, %v737
    %747 = vst [vmem:[#allocation1] ss:$2 sm:$0xff] %v707
    %v748 = vld.sshfl [vmem:[#allocation1] sm:$0xff pattern:$0x75316420]
    %v749 = vld.sshfl [vmem:[#allocation1 + $0x8] sm:$0xff pattern:$0x75316420]
    %752 = vrot.lane.b32.xlu0 %v748, 15
    %v753 = vpop.permute.xlu0 %752
    %754 = vrot.lane.b32.xlu0 %v749, 15
    %v755 = vpop.permute.xlu0 %754
    %v756 = vsel %vm99, %v753, %v755
    %v757 = vsel %vm99, %v755, %v753
    %v758 = vld [vmem:[%s102] ss:$8 sm:$0x3]
    %v760 = vperm.slane %v758, 0
    %v761 = vperm.slane %v758, 1
    %v764 = vmul.f32 %v760, %v757
    %v765 = vmul.f32 %v761, %v756
    %766 = vst [vmem:[#allocation1] ss:$2 sm:$0xff] %v707
    %v767 = vld.sshfl [vmem:[#allocation1] sm:$0xff pattern:$0x75316420]
    %v768 = vld.sshfl [vmem:[#allocation1 + $0x8] sm:$0xff pattern:$0x75316420]
    %771 = vrot.lane.b32.xlu0 %v767, 1
    %v772 = vpop.permute.xlu0 %771
    %773 = vrot.lane.b32.xlu0 %v768, 1
    %v774 = vpop.permute.xlu0 %773
    %v775 = vsel %vm120, %v772, %v774
    %v776 = vsel %vm120, %v774, %v772
    %v777 = vld [vmem:[%s123] ss:$8 sm:$0x3]
    %v779 = vperm.slane %v777, 0
    %v780 = vperm.slane %v777, 1
    %v783 = vmul.f32 %v779, %v776
    %v784 = vmul.f32 %v780, %v775
    %v785 = vld [vmem:[%s132] ss:$8 sm:$0x3]
    %v787 = vperm.slane %v785, 0
    %v788 = vperm.slane %v785, 1
    %791 = vst [vmem:[#allocation1] ss:$2 sm:$0xff] %v707
    %v792 = vld.sshfl [vmem:[#allocation1] sm:$0xff pattern:$0x75316420]
    %v793 = vld.sshfl [vmem:[#allocation1 + $0x8] sm:$0xff pattern:$0x75316420]
    %v796 = vmul.f32 %v787, %v792
    %v797 = vmul.f32 %v788, %v793
    %798 = vst [vmem:[#allocation1] ss:$2 sm:$0xff] %v707
    %v799 = vld.sshfl [vmem:[#allocation1] sm:$0xff pattern:$0x75316420]
    %v800 = vld.sshfl [vmem:[#allocation1 + $0x8] sm:$0xff pattern:$0x75316420]
    %803 = vrot.lane.b32.xlu0 %v799, 127
    %v804 = vpop.permute.xlu0 %803
    %805 = vrot.lane.b32.xlu0 %v800, 127
    %v806 = vpop.permute.xlu0 %805
    %v807 = vsel %vm155, %v804, %v806
    %v808 = vsel %vm155, %v806, %v804
    %v809 = vld [vmem:[%s158] ss:$8 sm:$0x3]
    %v811 = vperm.slane %v809, 0
    %v812 = vperm.slane %v809, 1
    %v815 = vmul.f32 %v811, %v807
    %v816 = vmul.f32 %v812, %v808
    %817 = vst [vmem:[#allocation1] ss:$2 sm:$0xff] %v707
    %v818 = vld.sshfl [vmem:[#allocation1] sm:$0xff pattern:$0x75316420]
    %v819 = vld.sshfl [vmem:[#allocation1 + $0x8] sm:$0xff pattern:$0x75316420]
    %822 = vrot.lane.b32.xlu0 %v818, 113
    %v823 = vpop.permute.xlu0 %822
    %824 = vrot.lane.b32.xlu0 %v819, 113
    %v825 = vpop.permute.xlu0 %824
    %v826 = vsel %vm176, %v823, %v825
    %v827 = vsel %vm176, %v825, %v823
    %v828 = vld [vmem:[%s179] ss:$8 sm:$0x3]
    %v830 = vperm.slane %v828, 0
    %v831 = vperm.slane %v828, 1
    %v834 = vmul.f32 %v830, %v826
    %v835 = vmul.f32 %v831, %v827
    %836 = vst [vmem:[#allocation1] ss:$2 sm:$0xff] %v707
    %v837 = vld.sshfl [vmem:[#allocation1] sm:$0xff pattern:$0x75316420]
    %v838 = vld.sshfl [vmem:[#allocation1 + $0x8] sm:$0xff pattern:$0x75316420]
    %841 = vrot.lane.b32.xlu0 %v837, 112
    %v842 = vpop.permute.xlu0 %841
    %843 = vrot.lane.b32.xlu0 %v838, 112
    %v844 = vpop.permute.xlu0 %843
    %v845 = vsel %vm197, %v842, %v844
    %v846 = vsel %vm197, %v844, %v842
    %v847 = vld [vmem:[%s200] ss:$8 sm:$0x3]
    %v849 = vperm.slane %v847, 0
    %v850 = vperm.slane %v847, 1
    %v853 = vmul.f32 %v849, %v845
    %v854 = vmul.f32 %v850, %v846
    %855 = vst [vmem:[#allocation1] ss:$2 sm:$0xff] %v707
    %v856 = vld.sshfl [vmem:[#allocation1] sm:$0xff pattern:$0x75316420]
    %v857 = vld.sshfl [vmem:[#allocation1 + $0x8] sm:$0xff pattern:$0x75316420]
    %860 = vrot.lane.b32.xlu0 %v856, 111
    %v861 = vpop.permute.xlu0 %860
    %862 = vrot.lane.b32.xlu0 %v857, 111
    %v863 = vpop.permute.xlu0 %862
    %v864 = vsel %vm218, %v861, %v863
    %v865 = vsel %vm218, %v863, %v861
    %v866 = vld [vmem:[%s221] ss:$8 sm:$0x3]
    %v868 = vperm.slane %v866, 0
    %v869 = vperm.slane %v866, 1
    %v872 = vmul.f32 %v868, %v864
    %v873 = vmul.f32 %v869, %v865
    %v874 = vld [vmem:[%s0] sm:$0xf]
    %876 = vset.pattern.permute.xlu0 0
    %877 = vperm.xlu0 %876, %v874
    %v878 = vpop.permute.xlu0 %877
    %v880 = vmul.f32 %v726, %v878
    %v881 = vmul.f32 %v727, %v878
    %v882 = vld [vmem:[%s238] sm:$0xf]
    %884 = vset.pattern.permute.xlu0 0
    %885 = vperm.xlu0 %884, %v882
    %v886 = vpop.permute.xlu0 %885
    %v888 = vmul.f32 %v745, %v886
    %v889 = vmul.f32 %v746, %v886
    %v890 = vadd.f32 %v880, %v888
    %v891 = vadd.f32 %v881, %v889
    %v892 = vld [vmem:[%s249] sm:$0xf]
    %894 = vset.pattern.permute.xlu0 0
    %895 = vperm.xlu0 %894, %v892
    %v896 = vpop.permute.xlu0 %895
    %v898 = vmul.f32 %v764, %v896
    %v899 = vmul.f32 %v765, %v896
    %v900 = vadd.f32 %v890, %v898
    %v901 = vadd.f32 %v891, %v899
    %v902 = vld [vmem:[%s260] sm:$0xf]
    %904 = vset.pattern.permute.xlu0 0
    %905 = vperm.xlu0 %904, %v902
    %v906 = vpop.permute.xlu0 %905
    %v908 = vmul.f32 %v783, %v906
    %v909 = vmul.f32 %v784, %v906
    %v910 = vadd.f32 %v900, %v908
    %v911 = vadd.f32 %v901, %v909
    %v912 = vld [vmem:[%s271] sm:$0xf]
    %914 = vset.pattern.permute.xlu0 0
    %915 = vperm.xlu0 %914, %v912
    %v916 = vpop.permute.xlu0 %915
    %v918 = vmul.f32 %v796, %v916
    %v919 = vmul.f32 %v797, %v916
    %v920 = vadd.f32 %v910, %v918
    %v921 = vadd.f32 %v911, %v919
    %v922 = vld [vmem:[%s282] sm:$0xf]
    %924 = vset.pattern.permute.xlu0 0
    %925 = vperm.xlu0 %924, %v922
    %v926 = vpop.permute.xlu0 %925
    %v928 = vmul.f32 %v815, %v926
    %v929 = vmul.f32 %v816, %v926
    %v930 = vadd.f32 %v920, %v928
    %v931 = vadd.f32 %v921, %v929
    %v932 = vld [vmem:[%s293] sm:$0xf]
    %934 = vset.pattern.permute.xlu0 0
    %935 = vperm.xlu0 %934, %v932
    %v936 = vpop.permute.xlu0 %935
    %v938 = vmul.f32 %v834, %v936
    %v939 = vmul.f32 %v835, %v936
    %v940 = vadd.f32 %v930, %v938
    %v941 = vadd.f32 %v931, %v939
    %v942 = vld [vmem:[%s304] sm:$0xf]
    %944 = vset.pattern.permute.xlu0 0
    %945 = vperm.xlu0 %944, %v942
    %v946 = vpop.permute.xlu0 %945
    %v948 = vmul.f32 %v853, %v946
    %v949 = vmul.f32 %v854, %v946
    %v950 = vadd.f32 %v940, %v948
    %v951 = vadd.f32 %v941, %v949
    %v952 = vld [vmem:[%s315] sm:$0xf]
    %954 = vset.pattern.permute.xlu0 0
    %955 = vperm.xlu0 %954, %v952
    %v956 = vpop.permute.xlu0 %955
    %v958 = vmul.f32 %v872, %v956
    %v959 = vmul.f32 %v873, %v956
    %v960 = vadd.f32 %v950, %v958
    %v961 = vadd.f32 %v951, %v959
    %v962 = vsel %vm326, %v960, 0.0
    %v963 = vrot.slane %v962, 4
    %v964 = vadd.f32 %v962, %v963
    %v965 = vrot.slane %v964, 2
    %v966 = vadd.f32 %v964, %v965
    %v967 = vrot.slane %v966, 1
    %v968 = vadd.f32 %v966, %v967
    %v969 = vsel %vm326, %v961, 0.0
    %v970 = vrot.slane %v969, 4
    %v971 = vadd.f32 %v969, %v970
    %v972 = vrot.slane %v971, 2
    %v973 = vadd.f32 %v971, %v972
    %v974 = vrot.slane %v973, 1
    %v975 = vadd.f32 %v973, %v974
    %v978 = vrot.slane %v975, 7
    %v979 = vsel %vm344, %v968, %v978
    %s981 = scalar_lea.vmem [#allocation2], 1
    %982 = vst.msk [vmem:[%s981] ss:$2 sm:$0x3] %vm350, %v979
    %v983 = vld [vmem:[%s352] sm:$0xf]
    %985 = vset.pattern.permute.xlu0 0
    %986 = vperm.xlu0 %985, %v983
    %v987 = vpop.permute.xlu0 %986
    %v989 = vmul.f32 %v726, %v987
    %v990 = vmul.f32 %v727, %v987
    %v991 = vld [vmem:[%s361] sm:$0xf]
    %993 = vset.pattern.permute.xlu0 0
    %994 = vperm.xlu0 %993, %v991
    %v995 = vpop.permute.xlu0 %994
    %v997 = vmul.f32 %v745, %v995
    %v998 = vmul.f32 %v746, %v995
    %v999 = vadd.f32 %v989, %v997
    %v1000 = vadd.f32 %v990, %v998
    %v1001 = vld [vmem:[%s372] sm:$0xf]
    %1003 = vset.pattern.permute.xlu0 0
    %1004 = vperm.xlu0 %1003, %v1001
    %v1005 = vpop.permute.xlu0 %1004
    %v1007 = vmul.f32 %v764, %v1005
    %v1008 = vmul.f32 %v765, %v1005
    %v1009 = vadd.f32 %v999, %v1007
    %v1010 = vadd.f32 %v1000, %v1008
    %v1011 = vld [vmem:[%s383] sm:$0xf]
    %1013 = vset.pattern.permute.xlu0 0
    %1014 = vperm.xlu0 %1013, %v1011
    %v1015 = vpop.permute.xlu0 %1014
    %v1017 = vmul.f32 %v783, %v1015
    %v1018 = vmul.f32 %v784, %v1015
    %v1019 = vadd.f32 %v1009, %v1017
    %v1020 = vadd.f32 %v1010, %v1018
    %v1021 = vld [vmem:[%s394] sm:$0xf]
    %1023 = vset.pattern.permute.xlu0 0
    %1024 = vperm.xlu0 %1023, %v1021
    %v1025 = vpop.permute.xlu0 %1024
    %v1027 = vmul.f32 %v796, %v1025
    %v1028 = vmul.f32 %v797, %v1025
    %v1029 = vadd.f32 %v1019, %v1027
    %v1030 = vadd.f32 %v1020, %v1028
    %v1031 = vld [vmem:[%s405] sm:$0xf]
    %1033 = vset.pattern.permute.xlu0 0
    %1034 = vperm.xlu0 %1033, %v1031
    %v1035 = vpop.permute.xlu0 %1034
    %v1037 = vmul.f32 %v815, %v1035
    %v1038 = vmul.f32 %v816, %v1035
    %v1039 = vadd.f32 %v1029, %v1037
    %v1040 = vadd.f32 %v1030, %v1038
    %v1041 = vld [vmem:[%s416] sm:$0xf]
    %1043 = vset.pattern.permute.xlu0 0
    %1044 = vperm.xlu0 %1043, %v1041
    %v1045 = vpop.permute.xlu0 %1044
    %v1047 = vmul.f32 %v834, %v1045
    %v1048 = vmul.f32 %v835, %v1045
    %v1049 = vadd.f32 %v1039, %v1047
    %v1050 = vadd.f32 %v1040, %v1048
    %v1051 = vld [vmem:[%s427] sm:$0xf]
    %1053 = vset.pattern.permute.xlu0 0
    %1054 = vperm.xlu0 %1053, %v1051
    %v1055 = vpop.permute.xlu0 %1054
    %v1057 = vmul.f32 %v853, %v1055
    %v1058 = vmul.f32 %v854, %v1055
    %v1059 = vadd.f32 %v1049, %v1057
    %v1060 = vadd.f32 %v1050, %v1058
    %v1061 = vld [vmem:[%s438] sm:$0xf]
    %1063 = vset.pattern.permute.xlu0 0
    %1064 = vperm.xlu0 %1063, %v1061
    %v1065 = vpop.permute.xlu0 %1064
    %v1067 = vmul.f32 %v872, %v1065
    %v1068 = vmul.f32 %v873, %v1065
    %v1069 = vadd.f32 %v1059, %v1067
    %v1070 = vadd.f32 %v1060, %v1068
    %v1071 = vsel %vm326, %v1069, 0.0
    %v1072 = vrot.slane %v1071, 4
    %v1073 = vadd.f32 %v1071, %v1072
    %v1074 = vrot.slane %v1073, 2
    %v1075 = vadd.f32 %v1073, %v1074
    %v1076 = vrot.slane %v1075, 1
    %v1077 = vadd.f32 %v1075, %v1076
    %v1078 = vsel %vm326, %v1070, 0.0
    %v1079 = vrot.slane %v1078, 4
    %v1080 = vadd.f32 %v1078, %v1079
    %v1081 = vrot.slane %v1080, 2
    %v1082 = vadd.f32 %v1080, %v1081
    %v1083 = vrot.slane %v1082, 1
    %v1084 = vadd.f32 %v1082, %v1083
    %v1087 = vrot.slane %v1084, 7
    %v1088 = vsel %vm344, %v1077, %v1087
    %s1090 = scalar_lea.vmem %s468, 1 [#allocation2]
    %1091 = vst.msk [vmem:[%s1090] ss:$2 sm:$0x3] %vm350, %v1088
    %v1092 = vld [vmem:[%s470] sm:$0xf]
    %1094 = vset.pattern.permute.xlu0 0
    %1095 = vperm.xlu0 %1094, %v1092
    %v1096 = vpop.permute.xlu0 %1095
    %v1098 = vmul.f32 %v726, %v1096
    %v1099 = vmul.f32 %v727, %v1096
    %v1100 = vld [vmem:[%s479] sm:$0xf]
    %1102 = vset.pattern.permute.xlu0 0
    %1103 = vperm.xlu0 %1102, %v1100
    %v1104 = vpop.permute.xlu0 %1103
    %v1106 = vmul.f32 %v745, %v1104
    %v1107 = vmul.f32 %v746, %v1104
    %v1108 = vadd.f32 %v1098, %v1106
    %v1109 = vadd.f32 %v1099, %v1107
    %v1110 = vld [vmem:[%s490] sm:$0xf]
    %1112 = vset.pattern.permute.xlu0 0
    %1113 = vperm.xlu0 %1112, %v1110
    %v1114 = vpop.permute.xlu0 %1113
    %v1116 = vmul.f32 %v764, %v1114
    %v1117 = vmul.f32 %v765, %v1114
    %v1118 = vadd.f32 %v1108, %v1116
    %v1119 = vadd.f32 %v1109, %v1117
    %v1120 = vld [vmem:[%s501] sm:$0xf]
    %1122 = vset.pattern.permute.xlu0 0
    %1123 = vperm.xlu0 %1122, %v1120
    %v1124 = vpop.permute.xlu0 %1123
    %v1126 = vmul.f32 %v783, %v1124
    %v1127 = vmul.f32 %v784, %v1124
    %v1128 = vadd.f32 %v1118, %v1126
    %v1129 = vadd.f32 %v1119, %v1127
    %v1130 = vld [vmem:[%s512] sm:$0xf]
    %1132 = vset.pattern.permute.xlu0 0
    %1133 = vperm.xlu0 %1132, %v1130
    %v1134 = vpop.permute.xlu0 %1133
    %v1136 = vmul.f32 %v796, %v1134
    %v1137 = vmul.f32 %v797, %v1134
    %v1138 = vadd.f32 %v1128, %v1136
    %v1139 = vadd.f32 %v1129, %v1137
    %v1140 = vld [vmem:[%s523] sm:$0xf]
    %1142 = vset.pattern.permute.xlu0 0
    %1143 = vperm.xlu0 %1142, %v1140
    %v1144 = vpop.permute.xlu0 %1143
    %v1146 = vmul.f32 %v815, %v1144
    %v1147 = vmul.f32 %v816, %v1144
    %v1148 = vadd.f32 %v1138, %v1146
    %v1149 = vadd.f32 %v1139, %v1147
    %v1150 = vld [vmem:[%s534] sm:$0xf]
    %1152 = vset.pattern.permute.xlu0 0
    %1153 = vperm.xlu0 %1152, %v1150
    %v1154 = vpop.permute.xlu0 %1153
    %v1156 = vmul.f32 %v834, %v1154
    %v1157 = vmul.f32 %v835, %v1154
    %v1158 = vadd.f32 %v1148, %v1156
    %v1159 = vadd.f32 %v1149, %v1157
    %v1160 = vld [vmem:[%s545] sm:$0xf]
    %1162 = vset.pattern.permute.xlu0 0
    %1163 = vperm.xlu0 %1162, %v1160
    %v1164 = vpop.permute.xlu0 %1163
    %v1166 = vmul.f32 %v853, %v1164
    %v1167 = vmul.f32 %v854, %v1164
    %v1168 = vadd.f32 %v1158, %v1166
    %v1169 = vadd.f32 %v1159, %v1167
    %v1170 = vld [vmem:[%s556] sm:$0xf]
    %1172 = vset.pattern.permute.xlu0 0
    %1173 = vperm.xlu0 %1172, %v1170
    %v1174 = vpop.permute.xlu0 %1173
    %v1176 = vmul.f32 %v872, %v1174
    %v1177 = vmul.f32 %v873, %v1174
    %v1178 = vadd.f32 %v1168, %v1176
    %v1179 = vadd.f32 %v1169, %v1177
    %v1180 = vsel %vm326, %v1178, 0.0
    %v1181 = vrot.slane %v1180, 4
    %v1182 = vadd.f32 %v1180, %v1181
    %v1183 = vrot.slane %v1182, 2
    %v1184 = vadd.f32 %v1182, %v1183
    %v1185 = vrot.slane %v1184, 1
    %v1186 = vadd.f32 %v1184, %v1185
    %v1187 = vsel %vm326, %v1179, 0.0
    %v1188 = vrot.slane %v1187, 4
    %v1189 = vadd.f32 %v1187, %v1188
    %v1190 = vrot.slane %v1189, 2
    %v1191 = vadd.f32 %v1189, %v1190
    %v1192 = vrot.slane %v1191, 1
    %v1193 = vadd.f32 %v1191, %v1192
    %v1196 = vrot.slane %v1193, 7
    %v1197 = vsel %vm344, %v1186, %v1196
    %s1199 = scalar_lea.vmem %s586, 1 [#allocation2]
    %1200 = vst.msk [vmem:[%s1199] ss:$2 sm:$0x3] %vm350, %v1197
    %v1201 = vld [vmem:[%s588] sm:$0xf]
    %1203 = vset.pattern.permute.xlu0 0
    %1204 = vperm.xlu0 %1203, %v1201
    %v1205 = vpop.permute.xlu0 %1204
    %v1207 = vmul.f32 %v726, %v1205
    %v1208 = vmul.f32 %v727, %v1205
    %v1209 = vld [vmem:[%s597] sm:$0xf]
    %1211 = vset.pattern.permute.xlu0 0
    %1212 = vperm.xlu0 %1211, %v1209
    %v1213 = vpop.permute.xlu0 %1212
    %v1215 = vmul.f32 %v745, %v1213
    %v1216 = vmul.f32 %v746, %v1213
    %v1217 = vadd.f32 %v1207, %v1215
    %v1218 = vadd.f32 %v1208, %v1216
    %v1219 = vld [vmem:[%s608] sm:$0xf]
    %1221 = vset.pattern.permute.xlu0 0
    %1222 = vperm.xlu0 %1221, %v1219
    %v1223 = vpop.permute.xlu0 %1222
    %v1225 = vmul.f32 %v764, %v1223
    %v1226 = vmul.f32 %v765, %v1223
    %v1227 = vadd.f32 %v1217, %v1225
    %v1228 = vadd.f32 %v1218, %v1226
    %v1229 = vld [vmem:[%s619] sm:$0xf]
    %1231 = vset.pattern.permute.xlu0 0
    %1232 = vperm.xlu0 %1231, %v1229
    %v1233 = vpop.permute.xlu0 %1232
    %v1235 = vmul.f32 %v783, %v1233
    %v1236 = vmul.f32 %v784, %v1233
    %v1237 = vadd.f32 %v1227, %v1235
    %v1238 = vadd.f32 %v1228, %v1236
    %v1239 = vld [vmem:[%s630] sm:$0xf]
    %1241 = vset.pattern.permute.xlu0 0
    %1242 = vperm.xlu0 %1241, %v1239
    %v1243 = vpop.permute.xlu0 %1242
    %v1245 = vmul.f32 %v796, %v1243
    %v1246 = vmul.f32 %v797, %v1243
    %v1247 = vadd.f32 %v1237, %v1245
    %v1248 = vadd.f32 %v1238, %v1246
    %v1249 = vld [vmem:[%s641] sm:$0xf]
    %1251 = vset.pattern.permute.xlu0 0
    %1252 = vperm.xlu0 %1251, %v1249
    %v1253 = vpop.permute.xlu0 %1252
    %v1255 = vmul.f32 %v815, %v1253
    %v1256 = vmul.f32 %v816, %v1253
    %v1257 = vadd.f32 %v1247, %v1255
    %v1258 = vadd.f32 %v1248, %v1256
    %v1259 = vld [vmem:[%s652] sm:$0xf]
    %1261 = vset.pattern.permute.xlu0 0
    %1262 = vperm.xlu0 %1261, %v1259
    %v1263 = vpop.permute.xlu0 %1262
    %v1265 = vmul.f32 %v834, %v1263
    %v1266 = vmul.f32 %v835, %v1263
    %v1267 = vadd.f32 %v1257, %v1265
    %v1268 = vadd.f32 %v1258, %v1266
    %v1269 = vld [vmem:[%s663] sm:$0xf]
    %1271 = vset.pattern.permute.xlu0 0
    %1272 = vperm.xlu0 %1271, %v1269
    %v1273 = vpop.permute.xlu0 %1272
    %v1275 = vmul.f32 %v853, %v1273
    %v1276 = vmul.f32 %v854, %v1273
    %v1277 = vadd.f32 %v1267, %v1275
    %v1278 = vadd.f32 %v1268, %v1276
    %v1279 = vld [vmem:[%s674] sm:$0xf]
    %1281 = vset.pattern.permute.xlu0 0
    %1282 = vperm.xlu0 %1281, %v1279
    %v1283 = vpop.permute.xlu0 %1282
    %v1285 = vmul.f32 %v872, %v1283
    %v1286 = vmul.f32 %v873, %v1283
    %v1287 = vadd.f32 %v1277, %v1285
    %v1288 = vadd.f32 %v1278, %v1286
    %v1289 = vsel %vm326, %v1287, 0.0
    %v1290 = vrot.slane %v1289, 4
    %v1291 = vadd.f32 %v1289, %v1290
    %v1292 = vrot.slane %v1291, 2
    %v1293 = vadd.f32 %v1291, %v1292
    %v1294 = vrot.slane %v1293, 1
    %v1295 = vadd.f32 %v1293, %v1294
    %v1296 = vsel %vm326, %v1288, 0.0
    %v1297 = vrot.slane %v1296, 4
    %v1298 = vadd.f32 %v1296, %v1297
    %v1299 = vrot.slane %v1298, 2
    %v1300 = vadd.f32 %v1298, %v1299
    %v1301 = vrot.slane %v1300, 1
    %v1302 = vadd.f32 %v1300, %v1301
    %v1305 = vrot.slane %v1302, 7
    %v1306 = vsel %vm344, %v1295, %v1305
    %s1308 = scalar_lea.vmem %s704, 1 [#allocation2]
    %1309 = vst.msk [vmem:[%s1308] ss:$2 sm:$0x3] %vm350, %v1306
    %s1310 = sld [smem:[#allocation5]]
    %s1311 = smul.u32 %s1310, 2
    %s1312 = smul.addr %s1311, 2
    %s1313 = scalar_lea.vmem [#allocation2], %s1312
    %v1314 = vld [vmem:[%s1313] sm:$0xf]
    %s1315 = sld [smem:[#allocation3]]
    %v1316 = vstv %s1315
    %v1317 = vmul.f32 %v1316, %v1314
    %v1319 = vrot.slane %v1317, 1
    %v1320 = vrot.slane %v1317, 2
    %v1321 = vrot.slane %v1317, 3
    %v1322 = vsel %vm344, %v1317, %v1319
    %vm1323 = vcmask 1042434
    %v1324 = vsel %vm1323, %v1320, %v1321
    %vm1325 = vcmask 1041408
    %v1326 = vsel %vm1325, %v1322, %v1324
    %1328 = vst.msk [vmem:[%s5] ss:$8 sm:$0x3] %vm350, %v1326
    %1329 = vst.msk [vmem:[%s5] ss:$8 sm:$0x0] %vm350, %v1326
    %1330 = vst [vmem:[#allocation1] sm:$0xff] %v1317
    %s1331 = scalar_lea.vmem [#allocation1], 1
    %v1332 = vld [vmem:[%s1331] ss:$2 sm:$0xff]
    %s1334 = scalar_lea.vmem %s5, 16
    %1335 = vst.msk [vmem:[%s1334] ss:$8 sm:$0x3] %vm350, %v1332
    %1336 = vst.msk [vmem:[%s1334] ss:$8 sm:$0x0] %vm350, %v1332
    %s1337 = sld [smem:[#allocation5 + $0x1]]
    %s1338 = smul.u32 %s1337, 2
    %s1339 = smul.addr %s1338, 2
    %s1340 = scalar_lea.vmem [#allocation2], %s1339
    %v1341 = vld [vmem:[%s1340] sm:$0xf]
    %s1342 = sld [smem:[#allocation3 + $0x1]]
    %v1343 = vstv %s1342
    %v1344 = vmul.f32 %v1343, %v1341
    %v1346 = vrot.slane %v1344, 1
    %v1347 = vrot.slane %v1344, 2
    %v1348 = vrot.slane %v1344, 3
    %v1349 = vsel %vm344, %v1344, %v1346
    %v1350 = vsel %vm1323, %v1347, %v1348
    %v1351 = vsel %vm1325, %v1349, %v1350
    %s1353 = scalar_lea.vmem %s5, 1
    %1354 = vst.msk [vmem:[%s1353] ss:$8 sm:$0x3] %vm350, %v1351
    %1355 = vst.msk [vmem:[%s1353] ss:$8 sm:$0x0] %vm350, %v1351
    %1356 = vst [vmem:[#allocation1] sm:$0xff] %v1344
    %s1357 = scalar_lea.vmem [#allocation1], 1
    %v1358 = vld [vmem:[%s1357] ss:$2 sm:$0xff]
    %s1360 = scalar_lea.vmem %s1334, 1
    %1361 = vst.msk [vmem:[%s1360] ss:$8 sm:$0x3] %vm350, %v1358
    %1362 = vst.msk [vmem:[%s1360] ss:$8 sm:$0x0] %vm350, %v1358
    %s1363 = sld [smem:[#allocation5 + $0x2]]
    %s1364 = smul.u32 %s1363, 2
    %s1365 = smul.addr %s1364, 2
    %s1366 = scalar_lea.vmem [#allocation2], %s1365
    %v1367 = vld [vmem:[%s1366] sm:$0xf]
    %s1368 = sld [smem:[#allocation3 + $0x2]]
    %v1369 = vstv %s1368
    %v1370 = vmul.f32 %v1369, %v1367
    %v1372 = vrot.slane %v1370, 1
    %v1373 = vrot.slane %v1370, 2
    %v1374 = vrot.slane %v1370, 3
    %v1375 = vsel %vm344, %v1370, %v1372
    %v1376 = vsel %vm1323, %v1373, %v1374
    %v1377 = vsel %vm1325, %v1375, %v1376
    %s1379 = scalar_lea.vmem %s5, 2
    %1380 = vst.msk [vmem:[%s1379] ss:$8 sm:$0x3] %vm350, %v1377
    %1381 = vst.msk [vmem:[%s1379] ss:$8 sm:$0x0] %vm350, %v1377
    %1382 = vst [vmem:[#allocation1] sm:$0xff] %v1370
    %s1383 = scalar_lea.vmem [#allocation1], 1
    %v1384 = vld [vmem:[%s1383] ss:$2 sm:$0xff]
    %s1386 = scalar_lea.vmem %s1334, 2
    %1387 = vst.msk [vmem:[%s1386] ss:$8 sm:$0x3] %vm350, %v1384
    %1388 = vst.msk [vmem:[%s1386] ss:$8 sm:$0x0] %vm350, %v1384
    %s1389 = sld [smem:[#allocation5 + $0x3]]
    %s1390 = smul.u32 %s1389, 2
    %s1391 = smul.addr %s1390, 2
    %s1392 = scalar_lea.vmem [#allocation2], %s1391
    %v1393 = vld [vmem:[%s1392] sm:$0xf]
    %s1394 = sld [smem:[#allocation3 + $0x3]]
    %v1395 = vstv %s1394
    %v1396 = vmul.f32 %v1395, %v1393
    %v1398 = vrot.slane %v1396, 1
    %v1399 = vrot.slane %v1396, 2
    %v1400 = vrot.slane %v1396, 3
    %v1401 = vsel %vm344, %v1396, %v1398
    %v1402 = vsel %vm1323, %v1399, %v1400
    %v1403 = vsel %vm1325, %v1401, %v1402
    %s1405 = scalar_lea.vmem %s5, 3
    %1406 = vst.msk [vmem:[%s1405] ss:$8 sm:$0x3] %vm350, %v1403
    %1407 = vst.msk [vmem:[%s1405] ss:$8 sm:$0x0] %vm350, %v1403
    %1408 = vst [vmem:[#allocation1] sm:$0xff] %v1396
    %s1409 = scalar_lea.vmem [#allocation1], 1
    %v1410 = vld [vmem:[%s1409] ss:$2 sm:$0xff]
    %s1412 = scalar_lea.vmem %s1334, 3
    %1413 = vst.msk [vmem:[%s1412] ss:$8 sm:$0x3] %vm350, %v1410
    %1414 = vst.msk [vmem:[%s1412] ss:$8 sm:$0x0] %vm350, %v1410
    %s1415 = sld [smem:[#allocation5 + $0x4]]
    %s1416 = smul.u32 %s1415, 2
    %s1417 = smul.addr %s1416, 2
    %s1418 = scalar_lea.vmem [#allocation2], %s1417
    %v1419 = vld [vmem:[%s1418] sm:$0xf]
    %s1420 = sld [smem:[#allocation3 + $0x4]]
    %v1421 = vstv %s1420
    %v1422 = vmul.f32 %v1421, %v1419
    %v1424 = vrot.slane %v1422, 1
    %v1425 = vrot.slane %v1422, 2
    %v1426 = vrot.slane %v1422, 3
    %v1427 = vsel %vm344, %v1422, %v1424
    %v1428 = vsel %vm1323, %v1425, %v1426
    %v1429 = vsel %vm1325, %v1427, %v1428
    %s1431 = scalar_lea.vmem %s5, 4
    %1432 = vst.msk [vmem:[%s1431] ss:$8 sm:$0x3] %vm350, %v1429
    %1433 = vst.msk [vmem:[%s1431] ss:$8 sm:$0x0] %vm350, %v1429
    %1434 = vst [vmem:[#allocation1] sm:$0xff] %v1422
    %s1435 = scalar_lea.vmem [#allocation1], 1
    %v1436 = vld [vmem:[%s1435] ss:$2 sm:$0xff]
    %s1438 = scalar_lea.vmem %s1334, 4
    %1439 = vst.msk [vmem:[%s1438] ss:$8 sm:$0x3] %vm350, %v1436
    %1440 = vst.msk [vmem:[%s1438] ss:$8 sm:$0x0] %vm350, %v1436
    %s1441 = sld [smem:[#allocation5 + $0x5]]
    %s1442 = smul.u32 %s1441, 2
    %s1443 = smul.addr %s1442, 2
    %s1444 = scalar_lea.vmem [#allocation2], %s1443
    %v1445 = vld [vmem:[%s1444] sm:$0xf]
    %s1446 = sld [smem:[#allocation3 + $0x5]]
    %v1447 = vstv %s1446
    %v1448 = vmul.f32 %v1447, %v1445
    %v1450 = vrot.slane %v1448, 1
    %v1451 = vrot.slane %v1448, 2
    %v1452 = vrot.slane %v1448, 3
    %v1453 = vsel %vm344, %v1448, %v1450
    %v1454 = vsel %vm1323, %v1451, %v1452
    %v1455 = vsel %vm1325, %v1453, %v1454
    %s1457 = scalar_lea.vmem %s5, 5
    %1458 = vst.msk [vmem:[%s1457] ss:$8 sm:$0x3] %vm350, %v1455
    %1459 = vst.msk [vmem:[%s1457] ss:$8 sm:$0x0] %vm350, %v1455
    %1460 = vst [vmem:[#allocation1] sm:$0xff] %v1448
    %s1461 = scalar_lea.vmem [#allocation1], 1
    %v1462 = vld [vmem:[%s1461] ss:$2 sm:$0xff]
    %s1464 = scalar_lea.vmem %s1334, 5
    %1465 = vst.msk [vmem:[%s1464] ss:$8 sm:$0x3] %vm350, %v1462
    %1466 = vst.msk [vmem:[%s1464] ss:$8 sm:$0x0] %vm350, %v1462
    %s1467 = sld [smem:[#allocation5 + $0x6]]
    %s1468 = smul.u32 %s1467, 2
    %s1469 = smul.addr %s1468, 2
    %s1470 = scalar_lea.vmem [#allocation2], %s1469
    %v1471 = vld [vmem:[%s1470] sm:$0xf]
    %s1472 = sld [smem:[#allocation3 + $0x6]]
    %v1473 = vstv %s1472
    %v1474 = vmul.f32 %v1473, %v1471
    %v1476 = vrot.slane %v1474, 1
    %v1477 = vrot.slane %v1474, 2
    %v1478 = vrot.slane %v1474, 3
    %v1479 = vsel %vm344, %v1474, %v1476
    %v1480 = vsel %vm1323, %v1477, %v1478
    %v1481 = vsel %vm1325, %v1479, %v1480
    %s1483 = scalar_lea.vmem %s5, 6
    %1484 = vst.msk [vmem:[%s1483] ss:$8 sm:$0x3] %vm350, %v1481
    %1485 = vst.msk [vmem:[%s1483] ss:$8 sm:$0x0] %vm350, %v1481
    %1486 = vst [vmem:[#allocation1] sm:$0xff] %v1474
    %s1487 = scalar_lea.vmem [#allocation1], 1
    %v1488 = vld [vmem:[%s1487] ss:$2 sm:$0xff]
    %s1490 = scalar_lea.vmem %s1334, 6
    %1491 = vst.msk [vmem:[%s1490] ss:$8 sm:$0x3] %vm350, %v1488
    %1492 = vst.msk [vmem:[%s1490] ss:$8 sm:$0x0] %vm350, %v1488
    %s1493 = sld [smem:[#allocation5 + $0x7]]
    %s1494 = smul.u32 %s1493, 2
    %s1495 = smul.addr %s1494, 2
    %s1496 = scalar_lea.vmem [#allocation2], %s1495
    %v1497 = vld [vmem:[%s1496] sm:$0xf]
    %s1498 = sld [smem:[#allocation3 + $0x7]]
    %v1499 = vstv %s1498
    %v1500 = vmul.f32 %v1499, %v1497
    %v1502 = vrot.slane %v1500, 1
    %v1503 = vrot.slane %v1500, 2
    %v1504 = vrot.slane %v1500, 3
    %v1505 = vsel %vm344, %v1500, %v1502
    %v1506 = vsel %vm1323, %v1503, %v1504
    %v1507 = vsel %vm1325, %v1505, %v1506
    %s1509 = scalar_lea.vmem %s5, 7
    %1510 = vst.msk [vmem:[%s1509] ss:$8 sm:$0x3] %vm350, %v1507
    %1511 = vst.msk [vmem:[%s1509] ss:$8 sm:$0x0] %vm350, %v1507
    %1512 = vst [vmem:[#allocation1] sm:$0xff] %v1500
    %s1513 = scalar_lea.vmem [#allocation1], 1
    %v1514 = vld [vmem:[%s1513] ss:$2 sm:$0xff]
    %s1516 = scalar_lea.vmem %s1334, 7
    %1517 = vst.msk [vmem:[%s1516] ss:$8 sm:$0x3] %vm350, %v1514
    %1518 = vst.msk [vmem:[%s1516] ss:$8 sm:$0x0] %vm350, %v1514
    // Predicated region
    $region30: #{lego_cnn_forward.1} parent=1 // pred_check
      _
    $region31: #{lego_cnn_forward.1} parent=1 // pred_check_branch
      %1520 = sbr.rel (0) target = $region33
    $region32: #{lego_cnn_forward.1} parent=1 // pred_region
      _
    $region33: #{lego_cnn_forward.1} parent=1 // pred_fallthru
      _
    // Predicated region
    $region34: #{lego_cnn_forward.1} parent=1 // pred_check
      _
    $region35: #{lego_cnn_forward.1} parent=1 // pred_check_branch
      %1522 = sbr.rel (0) target = $region37
    $region36: #{lego_cnn_forward.1} parent=1 // pred_region
      _
    $region37: #{lego_cnn_forward.1} parent=1 // pred_fallthru
      _
    %1523 = vsyncpa [#allocation4], 1
    %1524 = vsyncpa [#allocation6], 1

</llo_original>
